<compile_context>
chip_gen: v7x
topology: tpu7x:2x2x1
jax: 0.10.0
libtpu: 0.0.40
codegen_flags: <defaults>
</compile_context>

<pallas_src>
import functools

import numpy as np
import jax
import jax.numpy as jnp
from jax.experimental import pallas as pl
from jax.experimental.pallas import tpu as pltpu

BETA = 2
GAUSS_KSIZE = 13
GAUSS_SIGMA = 4.0
GAUSS_PAD = GAUSS_KSIZE // 2          # 6, reflect padding (torchvision GaussianBlur)
SHARP_PAD = 2                         # zero padding (F.conv2d(..., padding=2))


def _gaussian_kernel1d(ksize, sigma):
    # matches torchvision.transforms.functional._get_gaussian_kernel1d
    half = (ksize - 1) * 0.5
    xs = np.linspace(-half, half, ksize)
    pdf = np.exp(-0.5 * (xs / sigma) ** 2)
    return (pdf / pdf.sum()).astype(np.float32)


GK1D = _gaussian_kernel1d(GAUSS_KSIZE, GAUSS_SIGMA)                       # (13,)
SHARP_K = 0.25 * np.array([[0, 0, -1, 0, 0],
                           [0, -1, -2, -1, 0],
                           [-1, -2, 16, -2, -1],
                           [0, -1, -2, -1, 0],
                           [0, 0, -1, 0, 0]], dtype=np.float32)            # (5, 5)


def _reflect(p, n):
    # numpy / torchvision 'reflect' (edge not repeated); needs n > GAUSS_PAD
    if p < 0:
        return -p
    if p >= n:
        return 2 * n - 2 - p
    return p


def _gauss_band(n):
    # m[c, x] = sum_k GK1D[k] * [reflect(x + k - 6, n) == c]
    m = np.zeros((n, n), np.float32)
    for x in range(n):
        for k in range(GAUSS_KSIZE):
            m[_reflect(x + k - GAUSS_PAD, n), x] += GK1D[k]
    return m


def _zero_band(profile, n):
    # m[c, x] = sum_d profile[d] * [x + d - 2 == c], zero padding outside [0, n)
    m = np.zeros((n, n), np.float32)
    for x in range(n):
        for d in range(5):
            c = x + d - SHARP_PAD
            if 0 <= c < n:
                m[c, x] += profile[d]
    return m


@functools.lru_cache(maxsize=None)
def _hband_cat(W):
    """Concatenated (W, 4W) horizontal banded operators (applied as x @ m)."""
    mats = [_gauss_band(W),              # 13-tap Gaussian, reflect padding
            _zero_band(SHARP_K[0], W),   # sharp rows 0 and 4
            _zero_band(SHARP_K[1], W),   # sharp rows 1 and 3
            _zero_band(SHARP_K[2], W)]   # sharp row 2
    return np.concatenate(mats, axis=1).astype(np.float32)


def _choose_tiles(B, J, H, W, target_f32_bytes=1 << 20):
    """Pick (Bt, Jt) divisors of (B, J): ~1 MiB f32 per step, >= 2 grid steps."""
    plane = H * W * 4
    jt = J
    if J * plane > target_f32_bytes:
        jt = max((d for d in range(1, J + 1)
                  if J % d == 0 and d * plane <= target_f32_bytes), default=1)
    bt = max((d for d in range(1, B + 1)
              if B % d == 0 and d * jt * plane <= target_f32_bytes), default=1)
    if (B // bt) * (J // jt) < 2:
        if bt > 1:                      # split the batch tile first
            bt = max(d for d in range(1, bt) if B % d == 0)
        elif jt > 1:                    # otherwise split joints (v7x megacore)
            cand = max(d for d in range(1, jt) if J % d == 0)
            if 2 * cand >= jt:          # only if the tiles stay reasonably large
                jt = cand
    return bt, jt


def _gfl_kernel(pred_ref, gt_ref, hcat_ref, out_ref, *, N, H, W):
    pred = pred_ref[...].astype(jnp.float32).reshape(N, H, W)
    gt = gt_ref[...].astype(jnp.float32).reshape(N, H, W)

    # Horizontal pass: one wide MXU matmul against all four banded operators.
    hres = jnp.dot(gt.reshape(N * H, W), hcat_ref[...],
                   preferred_element_type=jnp.float32,
                   precision=jax.lax.Precision.HIGHEST)
    hres = hres.reshape(N, H, 4 * W)
    g_h = hres[:, :, 0 * W:1 * W]       # horizontally Gaussian-filtered gt
    s0_h = hres[:, :, 1 * W:2 * W]      # sharp rows 0/4 profile
    s1_h = hres[:, :, 2 * W:3 * W]      # sharp rows 1/3 profile
    s2_h = hres[:, :, 3 * W:4 * W]      # sharp row 2 profile

    # Vertical 13-tap Gaussian (reflect padding) as a sublane shift-MAC.
    top = [g_h[:, r:r + 1, :] for r in range(GAUSS_PAD, 0, -1)]             # rows 6..1
    bot = [g_h[:, r:r + 1, :] for r in range(H - 2, H - 2 - GAUSS_PAD, -1)]  # rows H-2..H-7
    gpad = jnp.concatenate(top + [g_h] + bot, axis=1)                       # (N, H+12, W)
    smooth = float(GK1D[0]) * gpad[:, 0:H, :]
    for k in range(1, GAUSS_KSIZE):
        smooth = smooth + float(GK1D[k]) * gpad[:, k:k + H, :]

    # Vertical part of the 5x5 sharpening conv: +/-2, +/-1 row shifts (zero pad).
    z1 = jnp.zeros((N, 1, W), jnp.float32)
    z2 = jnp.zeros((N, 2, W), jnp.float32)
    sharp = (jnp.concatenate([s0_h[:, 2:, :], z2], axis=1)        # row y+2
             + jnp.concatenate([z2, s0_h[:, :H - 2, :]], axis=1)  # row y-2
             + jnp.concatenate([s1_h[:, 1:, :], z1], axis=1)      # row y+1
             + jnp.concatenate([z1, s1_h[:, :H - 1, :]], axis=1)  # row y-1
             + s2_h)

    # GFL loss terms (beta = 2).
    wl = jnp.abs(sharp - gt)
    wr = jnp.abs(gt - smooth)
    err = (pred - gt) ** BETA
    loss = ((pred - sharp) ** 2 * wl + (pred - smooth) ** 2 * wr) * err

    # One lane-dense partial sum per grid step (unmasked store); mean finished outside.
    out_ref[...] = jnp.broadcast_to(jnp.sum(loss), out_ref.shape).astype(out_ref.dtype)


def gfl_5x5_loss(pred, target, target_weight=None):
    """GFL_5x5.forward(pred, target, target_weight) -> scalar mean loss."""
    del target_weight  # the reference forward never uses it
    B, J, H, W = pred.shape
    assert H > GAUSS_PAD and W > GAUSS_PAD, "reflect padding needs H, W >= 7"

    hcat = jnp.asarray(_hband_cat(W))                     # (W, 4W) constant operator
    bt, jt = _choose_tiles(B, J, H, W)
    nb, nj = B // bt, J // jt

    # VMEM footprint estimate (inputs stay in their native dtype).
    itemsize = max(pred.dtype.itemsize, target.dtype.itemsize)
    blk_in = bt * jt * H * W * itemsize
    blk_f32 = bt * jt * H * W * 4
    est = (2 * 2 * blk_in              # pred + target blocks, double-buffered
           + 2 * 4 * 4 * W * W         # (W, 4W) band matrix, double-buffered
           + 16 * blk_f32              # conv / loss intermediates (f32)
           + 2 * 4 * 8 * 128)          # partial-sum output block
    # TODO(synk): for extremely large single heatmaps (>~2 MiB per joint) an
    # extra H-tiling grid axis would be needed instead of raising this limit.
    vmem_limit = int(min(max(1.25 * est + (1 << 20), 16 << 20), 40 << 20))

    kernel = functools.partial(_gfl_kernel, N=bt * jt, H=H, W=W)
    partials = pl.pallas_call(
        kernel,
        out_shape=jax.ShapeDtypeStruct((nb, nj, 8, 128), jnp.float32),
        grid_spec=pltpu.PrefetchScalarGridSpec(
            num_scalar_prefetch=0,
            grid=(nb, nj),
            in_specs=[
                pl.BlockSpec((bt, jt, H, W), lambda b, j: (b, j, 0, 0)),
                pl.BlockSpec((bt, jt, H, W), lambda b, j: (b, j, 0, 0)),
                pl.BlockSpec((W, 4 * W), lambda b, j: (0, 0)),   # constant, not re-DMA'd
            ],
            out_specs=pl.BlockSpec((1, 1, 8, 128), lambda b, j: (b, j, 0, 0)),
        ),
        compiler_params=pltpu.CompilerParams(
            dimension_semantics=("parallel", "parallel"),
            vmem_limit_bytes=vmem_limit),
    )(pred, target, hcat)

    return jnp.sum(partials[:, :, 0, 0]) / float(B * J * H * W)


def gfl_5x5_ref(pred, target):
    """Pure-JAX reference (pad + shift-MAC) for correctness checking."""
    B, J, H, W = pred.shape
    pred = pred.astype(jnp.float32)
    target = target.astype(jnp.float32)
    gt_refl = jnp.pad(target, ((0, 0), (0, 0), (GAUSS_PAD, GAUSS_PAD),
                               (GAUSS_PAD, GAUSS_PAD)), mode="reflect")
    gt_zero = jnp.pad(target, ((0, 0), (0, 0), (SHARP_PAD, SHARP_PAD),
                               (SHARP_PAD, SHARP_PAD)))
    tmp = sum(float(GK1D[i]) * gt_refl[..., :, i:i + W] for i in range(GAUSS_KSIZE))
    smooth = sum(float(GK1D[i]) * tmp[..., i:i + H, :] for i in range(GAUSS_KSIZE))
    sharp = sum(float(SHARP_K[dy, dx]) * gt_zero[..., dy:dy + H, dx:dx + W]
                for dy in range(5) for dx in range(5) if SHARP_K[dy, dx] != 0.0)
    wl = jnp.abs(sharp - target)
    wr = jnp.abs(target - smooth)
    err = (pred - target) ** BETA
    loss = ((pred - sharp) ** 2 * wl + (pred - smooth) ** 2 * wr) * err
    return loss.mean()


if __name__ == "__main__":
    B, J, H, W = 2, 4, 16, 16
    key = jax.random.PRNGKey(0)
    k1, k2 = jax.random.split(key)
    pred = jax.random.uniform(k1, (B, J, H, W), dtype=jnp.float32)
    target = jax.random.uniform(k2, (B, J, H, W), dtype=jnp.float32)
    target_weight = jnp.ones((B, J, 1), dtype=jnp.float32)

    loss = gfl_5x5_loss(pred, target, target_weight)
    jax.block_until_ready(loss)

    ref = gfl_5x5_ref(pred, target)
    # precision=HIGHEST on the only matmul -> near-f32 accuracy; tight tolerance.
    np.testing.assert_allclose(np.asarray(loss), np.asarray(ref),
                               rtol=1e-3, atol=1e-6)
    print("KERNEL_OK")
</pallas_src>

<mosaic_0001>
module attributes {stable_mosaic.version = 11 : i64} {
  func.func @_gfl_kernel(%arg0: i32, %arg1: i32, %arg2: memref<1x4x16x16xf32, #tpu.memory_space<vmem>>, %arg3: memref<1x4x16x16xf32, #tpu.memory_space<vmem>>, %arg4: memref<16x64xf32, #tpu.memory_space<vmem>>, %arg5: memref<1x1x8x128xf32, #tpu.memory_space<vmem>>) attributes {dimension_semantics = [#tpu.dimension_semantics<parallel>, #tpu.dimension_semantics<parallel>], iteration_bounds = array<i64: 2, 1>, scalar_prefetch = 0 : i64, scratch_operands = 0 : i64, tpu.core_type = #tpu.core_type<tc>, window_params = [{transform_indices = @transform_0, window_bounds = array<i64: 1, 4, 16, 16>}, {transform_indices = @transform_1, window_bounds = array<i64: 1, 4, 16, 16>}, {pipeline_mode = #tpu.pipeline_mode<synchronous>, transform_indices = @transform_2, window_bounds = array<i64: 16, 64>}, {transform_indices = @transform_3, window_bounds = array<i64: 1, 1, 8, 128>}]} {
    %c0 = arith.constant 0 : index
    %c0_0 = arith.constant 0 : index
    %c0_1 = arith.constant 0 : index
    %c0_2 = arith.constant 0 : index
    %0 = vector.load %arg2[%c0, %c0_0, %c0_1, %c0_2] : memref<1x4x16x16xf32, #tpu.memory_space<vmem>>, vector<1x4x16x16xf32>
    %1 = vector.shape_cast %0 : vector<1x4x16x16xf32> to vector<4x16x16xf32>
    %c0_3 = arith.constant 0 : index
    %c0_4 = arith.constant 0 : index
    %c0_5 = arith.constant 0 : index
    %c0_6 = arith.constant 0 : index
    %2 = vector.load %arg3[%c0_3, %c0_4, %c0_5, %c0_6] : memref<1x4x16x16xf32, #tpu.memory_space<vmem>>, vector<1x4x16x16xf32>
    %3 = vector.shape_cast %2 : vector<1x4x16x16xf32> to vector<4x16x16xf32>
    %4 = vector.shape_cast %3 : vector<4x16x16xf32> to vector<64x16xf32>
    %c0_7 = arith.constant 0 : index
    %c0_8 = arith.constant 0 : index
    %5 = vector.load %arg4[%c0_7, %c0_8] : memref<16x64xf32, #tpu.memory_space<vmem>>, vector<16x64xf32>
    %cst = arith.constant dense<0.000000e+00> : vector<64x64xf32>
    %6 = tpu.matmul %4, %5, %cst {dimension_numbers = #tpu.dot_dimension_numbers<[1], [0], [0], [1], [0, 0, 1, 1], [], []>, precision = #tpu.contract_precision<fp32>} : vector<64x16xf32>, vector<16x64xf32>, vector<64x64xf32> -> vector<64x64xf32>
    %7 = vector.shape_cast %6 : vector<64x64xf32> to vector<4x16x64xf32>
    %8 = vector.extract_strided_slice %7 {offsets = [0, 0, 0], sizes = [4, 16, 16], strides = [1, 1, 1]} : vector<4x16x64xf32> to vector<4x16x16xf32>
    %9 = vector.extract_strided_slice %7 {offsets = [0, 0, 16], sizes = [4, 16, 16], strides = [1, 1, 1]} : vector<4x16x64xf32> to vector<4x16x16xf32>
    %10 = vector.extract_strided_slice %7 {offsets = [0, 0, 32], sizes = [4, 16, 16], strides = [1, 1, 1]} : vector<4x16x64xf32> to vector<4x16x16xf32>
    %11 = vector.extract_strided_slice %7 {offsets = [0, 0, 48], sizes = [4, 16, 16], strides = [1, 1, 1]} : vector<4x16x64xf32> to vector<4x16x16xf32>
    %12 = vector.extract_strided_slice %8 {offsets = [0, 6, 0], sizes = [4, 1, 16], strides = [1, 1, 1]} : vector<4x16x16xf32> to vector<4x1x16xf32>
    %13 = vector.extract_strided_slice %8 {offsets = [0, 5, 0], sizes = [4, 1, 16], strides = [1, 1, 1]} : vector<4x16x16xf32> to vector<4x1x16xf32>
    %14 = vector.extract_strided_slice %8 {offsets = [0, 4, 0], sizes = [4, 1, 16], strides = [1, 1, 1]} : vector<4x16x16xf32> to vector<4x1x16xf32>
    %15 = vector.extract_strided_slice %8 {offsets = [0, 3, 0], sizes = [4, 1, 16], strides = [1, 1, 1]} : vector<4x16x16xf32> to vector<4x1x16xf32>
    %16 = vector.extract_strided_slice %8 {offsets = [0, 2, 0], sizes = [4, 1, 16], strides = [1, 1, 1]} : vector<4x16x16xf32> to vector<4x1x16xf32>
    %17 = vector.extract_strided_slice %8 {offsets = [0, 1, 0], sizes = [4, 1, 16], strides = [1, 1, 1]} : vector<4x16x16xf32> to vector<4x1x16xf32>
    %18 = vector.extract_strided_slice %8 {offsets = [0, 14, 0], sizes = [4, 1, 16], strides = [1, 1, 1]} : vector<4x16x16xf32> to vector<4x1x16xf32>
    %19 = vector.extract_strided_slice %8 {offsets = [0, 13, 0], sizes = [4, 1, 16], strides = [1, 1, 1]} : vector<4x16x16xf32> to vector<4x1x16xf32>
    %20 = vector.extract_strided_slice %8 {offsets = [0, 12, 0], sizes = [4, 1, 16], strides = [1, 1, 1]} : vector<4x16x16xf32> to vector<4x1x16xf32>
    %21 = vector.extract_strided_slice %8 {offsets = [0, 11, 0], sizes = [4, 1, 16], strides = [1, 1, 1]} : vector<4x16x16xf32> to vector<4x1x16xf32>
    %22 = vector.extract_strided_slice %8 {offsets = [0, 10, 0], sizes = [4, 1, 16], strides = [1, 1, 1]} : vector<4x16x16xf32> to vector<4x1x16xf32>
    %23 = vector.extract_strided_slice %8 {offsets = [0, 9, 0], sizes = [4, 1, 16], strides = [1, 1, 1]} : vector<4x16x16xf32> to vector<4x1x16xf32>
    %24 = tpu.concatenate %12, %13, %14, %15, %16, %17, %8, %18, %19, %20, %21, %22, %23 in 1 : vector<4x1x16xf32>, vector<4x1x16xf32>, vector<4x1x16xf32>, vector<4x1x16xf32>, vector<4x1x16xf32>, vector<4x1x16xf32>, vector<4x16x16xf32>, vector<4x1x16xf32>, vector<4x1x16xf32>, vector<4x1x16xf32>, vector<4x1x16xf32>, vector<4x1x16xf32>, vector<4x1x16xf32> -> vector<4x28x16xf32>
    %25 = vector.extract_strided_slice %24 {offsets = [0, 0, 0], sizes = [4, 16, 16], strides = [1, 1, 1]} : vector<4x28x16xf32> to vector<4x16x16xf32>
    %cst_9 = arith.constant 0.0361079127 : f32
    %26 = vector.broadcast %cst_9 : f32 to vector<4x16x16xf32>
    %27 = arith.mulf %26, %25 : vector<4x16x16xf32>
    %28 = vector.extract_strided_slice %24 {offsets = [0, 1, 0], sizes = [4, 16, 16], strides = [1, 1, 1]} : vector<4x28x16xf32> to vector<4x16x16xf32>
    %cst_10 = arith.constant 0.0509203188 : f32
    %29 = vector.broadcast %cst_10 : f32 to vector<4x16x16xf32>
    %30 = arith.mulf %29, %28 : vector<4x16x16xf32>
    %31 = arith.addf %27, %30 : vector<4x16x16xf32>
    %32 = vector.extract_strided_slice %24 {offsets = [0, 2, 0], sizes = [4, 16, 16], strides = [1, 1, 1]} : vector<4x28x16xf32> to vector<4x16x16xf32>
    %cst_11 = arith.constant 0.0674584582 : f32
    %33 = vector.broadcast %cst_11 : f32 to vector<4x16x16xf32>
    %34 = arith.mulf %33, %32 : vector<4x16x16xf32>
    %35 = arith.addf %31, %34 : vector<4x16x16xf32>
    %36 = vector.extract_strided_slice %24 {offsets = [0, 3, 0], sizes = [4, 16, 16], strides = [1, 1, 1]} : vector<4x28x16xf32> to vector<4x16x16xf32>
    %cst_12 = arith.constant 0.0839534103 : f32
    %37 = vector.broadcast %cst_12 : f32 to vector<4x16x16xf32>
    %38 = arith.mulf %37, %36 : vector<4x16x16xf32>
    %39 = arith.addf %35, %38 : vector<4x16x16xf32>
    %40 = vector.extract_strided_slice %24 {offsets = [0, 4, 0], sizes = [4, 16, 16], strides = [1, 1, 1]} : vector<4x28x16xf32> to vector<4x16x16xf32>
    %cst_13 = arith.constant 0.0981514826 : f32
    %41 = vector.broadcast %cst_13 : f32 to vector<4x16x16xf32>
    %42 = arith.mulf %41, %40 : vector<4x16x16xf32>
    %43 = arith.addf %39, %42 : vector<4x16x16xf32>
    %44 = vector.extract_strided_slice %24 {offsets = [0, 5, 0], sizes = [4, 16, 16], strides = [1, 1, 1]} : vector<4x28x16xf32> to vector<4x16x16xf32>
    %cst_14 = arith.constant 0.107798316 : f32
    %45 = vector.broadcast %cst_14 : f32 to vector<4x16x16xf32>
    %46 = arith.mulf %45, %44 : vector<4x16x16xf32>
    %47 = arith.addf %43, %46 : vector<4x16x16xf32>
    %48 = vector.extract_strided_slice %24 {offsets = [0, 6, 0], sizes = [4, 16, 16], strides = [1, 1, 1]} : vector<4x28x16xf32> to vector<4x16x16xf32>
    %cst_15 = arith.constant 0.111220203 : f32
    %49 = vector.broadcast %cst_15 : f32 to vector<4x16x16xf32>
    %50 = arith.mulf %49, %48 : vector<4x16x16xf32>
    %51 = arith.addf %47, %50 : vector<4x16x16xf32>
    %52 = vector.extract_strided_slice %24 {offsets = [0, 7, 0], sizes = [4, 16, 16], strides = [1, 1, 1]} : vector<4x28x16xf32> to vector<4x16x16xf32>
    %cst_16 = arith.constant 0.107798316 : f32
    %53 = vector.broadcast %cst_16 : f32 to vector<4x16x16xf32>
    %54 = arith.mulf %53, %52 : vector<4x16x16xf32>
    %55 = arith.addf %51, %54 : vector<4x16x16xf32>
    %56 = vector.extract_strided_slice %24 {offsets = [0, 8, 0], sizes = [4, 16, 16], strides = [1, 1, 1]} : vector<4x28x16xf32> to vector<4x16x16xf32>
    %cst_17 = arith.constant 0.0981514826 : f32
    %57 = vector.broadcast %cst_17 : f32 to vector<4x16x16xf32>
    %58 = arith.mulf %57, %56 : vector<4x16x16xf32>
    %59 = arith.addf %55, %58 : vector<4x16x16xf32>
    %60 = vector.extract_strided_slice %24 {offsets = [0, 9, 0], sizes = [4, 16, 16], strides = [1, 1, 1]} : vector<4x28x16xf32> to vector<4x16x16xf32>
    %cst_18 = arith.constant 0.0839534103 : f32
    %61 = vector.broadcast %cst_18 : f32 to vector<4x16x16xf32>
    %62 = arith.mulf %61, %60 : vector<4x16x16xf32>
    %63 = arith.addf %59, %62 : vector<4x16x16xf32>
    %64 = vector.extract_strided_slice %24 {offsets = [0, 10, 0], sizes = [4, 16, 16], strides = [1, 1, 1]} : vector<4x28x16xf32> to vector<4x16x16xf32>
    %cst_19 = arith.constant 0.0674584582 : f32
    %65 = vector.broadcast %cst_19 : f32 to vector<4x16x16xf32>
    %66 = arith.mulf %65, %64 : vector<4x16x16xf32>
    %67 = arith.addf %63, %66 : vector<4x16x16xf32>
    %68 = vector.extract_strided_slice %24 {offsets = [0, 11, 0], sizes = [4, 16, 16], strides = [1, 1, 1]} : vector<4x28x16xf32> to vector<4x16x16xf32>
    %cst_20 = arith.constant 0.0509203188 : f32
    %69 = vector.broadcast %cst_20 : f32 to vector<4x16x16xf32>
    %70 = arith.mulf %69, %68 : vector<4x16x16xf32>
    %71 = arith.addf %67, %70 : vector<4x16x16xf32>
    %72 = vector.extract_strided_slice %24 {offsets = [0, 12, 0], sizes = [4, 16, 16], strides = [1, 1, 1]} : vector<4x28x16xf32> to vector<4x16x16xf32>
    %cst_21 = arith.constant 0.0361079127 : f32
    %73 = vector.broadcast %cst_21 : f32 to vector<4x16x16xf32>
    %74 = arith.mulf %73, %72 : vector<4x16x16xf32>
    %75 = arith.addf %71, %74 : vector<4x16x16xf32>
    %cst_22 = arith.constant 0.000000e+00 : f32
    %76 = vector.broadcast %cst_22 : f32 to vector<4x1x16xf32>
    %cst_23 = arith.constant 0.000000e+00 : f32
    %77 = vector.broadcast %cst_23 : f32 to vector<4x2x16xf32>
    %78 = vector.extract_strided_slice %9 {offsets = [0, 2, 0], sizes = [4, 14, 16], strides = [1, 1, 1]} : vector<4x16x16xf32> to vector<4x14x16xf32>
    %79 = tpu.concatenate %78, %77 in 1 : vector<4x14x16xf32>, vector<4x2x16xf32> -> vector<4x16x16xf32>
    %80 = vector.extract_strided_slice %9 {offsets = [0, 0, 0], sizes = [4, 14, 16], strides = [1, 1, 1]} : vector<4x16x16xf32> to vector<4x14x16xf32>
    %81 = tpu.concatenate %77, %80 in 1 : vector<4x2x16xf32>, vector<4x14x16xf32> -> vector<4x16x16xf32>
    %82 = arith.addf %79, %81 : vector<4x16x16xf32>
    %83 = vector.extract_strided_slice %10 {offsets = [0, 1, 0], sizes = [4, 15, 16], strides = [1, 1, 1]} : vector<4x16x16xf32> to vector<4x15x16xf32>
    %84 = tpu.concatenate %83, %76 in 1 : vector<4x15x16xf32>, vector<4x1x16xf32> -> vector<4x16x16xf32>
    %85 = arith.addf %82, %84 : vector<4x16x16xf32>
    %86 = vector.extract_strided_slice %10 {offsets = [0, 0, 0], sizes = [4, 15, 16], strides = [1, 1, 1]} : vector<4x16x16xf32> to vector<4x15x16xf32>
    %87 = tpu.concatenate %76, %86 in 1 : vector<4x1x16xf32>, vector<4x15x16xf32> -> vector<4x16x16xf32>
    %88 = arith.addf %85, %87 : vector<4x16x16xf32>
    %89 = arith.addf %88, %11 : vector<4x16x16xf32>
    %90 = arith.subf %89, %3 : vector<4x16x16xf32>
    %91 = math.absf %90 : vector<4x16x16xf32>
    %92 = arith.subf %3, %75 : vector<4x16x16xf32>
    %93 = math.absf %92 : vector<4x16x16xf32>
    %94 = arith.subf %1, %3 : vector<4x16x16xf32>
    %95 = arith.mulf %94, %94 : vector<4x16x16xf32>
    %96 = arith.subf %1, %89 : vector<4x16x16xf32>
    %97 = arith.mulf %96, %96 : vector<4x16x16xf32>
    %98 = arith.mulf %97, %91 : vector<4x16x16xf32>
    %99 = arith.subf %1, %75 : vector<4x16x16xf32>
    %100 = arith.mulf %99, %99 : vector<4x16x16xf32>
    %101 = arith.mulf %100, %93 : vector<4x16x16xf32>
    %102 = arith.addf %98, %101 : vector<4x16x16xf32>
    %103 = arith.mulf %102, %95 : vector<4x16x16xf32>
    %104 = vector.shape_cast %103 : vector<4x16x16xf32> to vector<1x4x16x16xf32>
    %cst_24 = arith.constant dense<0.000000e+00> : vector<1xf32>
    %105 = vector.multi_reduction <add>, %104, %cst_24 [1, 2, 3] : vector<1x4x16x16xf32> to vector<1xf32>
    %106 = vector.shape_cast %105 : vector<1xf32> to vector<1x1x1x1xf32>
    %107 = vector.extract %106[0, 0, 0, 0] : f32 from vector<1x1x1x1xf32>
    %108 = vector.broadcast %107 : f32 to vector<1x1x8x128xf32>
    %c0_25 = arith.constant 0 : index
    %c0_26 = arith.constant 0 : index
    %c0_27 = arith.constant 0 : index
    %c0_28 = arith.constant 0 : index
    %109 = vector.load %arg5[%c0_25, %c0_26, %c0_27, %c0_28] : memref<1x1x8x128xf32, #tpu.memory_space<vmem>>, vector<1x1x8x128xf32>
    tpu.vector_store %arg5[%c0_25, %c0_26, %c0_27, %c0_28], %108 {strides = array<i32>} : memref<1x1x8x128xf32, #tpu.memory_space<vmem>>, vector<1x1x8x128xf32>,
    return
  }
  func.func @transform_0(%arg0: i32, %arg1: i32) -> (i32, i32, i32, i32) {
    %c0_i32 = arith.constant 0 : i32
    %c0_i32_0 = arith.constant 0 : i32
    %c0_i32_1 = arith.constant 0 : i32
    return %arg0, %arg1, %c0_i32, %c0_i32_0 : i32, i32, i32, i32
  }
  func.func @transform_1(%arg0: i32, %arg1: i32) -> (i32, i32, i32, i32) {
    %c0_i32 = arith.constant 0 : i32
    %c0_i32_0 = arith.constant 0 : i32
    %c0_i32_1 = arith.constant 0 : i32
    return %arg0, %arg1, %c0_i32, %c0_i32_0 : i32, i32, i32, i32
  }
  func.func @transform_2(%arg0: i32, %arg1: i32) -> (i32, i32) {
    %c0_i32 = arith.constant 0 : i32
    %c0_i32_0 = arith.constant 0 : i32
    %c0_i32_1 = arith.constant 0 : i32
    return %c0_i32, %c0_i32_0 : i32, i32
  }
  func.func @transform_3(%arg0: i32, %arg1: i32) -> (i32, i32, i32, i32) {
    %c0_i32 = arith.constant 0 : i32
    %c0_i32_0 = arith.constant 0 : i32
    %c0_i32_1 = arith.constant 0 : i32
    return %arg0, %arg1, %c0_i32, %c0_i32_0 : i32, i32, i32, i32
  }
}

</mosaic_0001>

<llo_original>
// kernel: tpu_custom_call.1
$region0: #{tpu_custom_call.1}
  #allocation0 [shape = 'u32[]', space=smem, size = 0x4, offset = 0x4, fixed_abs, tag = 'smem constant byte address 0x4 - core index']
  #allocation1 [shape = 'u32[144,128]{1,0:T(1,128)}', space=vmem, size = 0x12000, scoped, tag = 'internal scratch']
  %s0 = inlined_call_operand.hbm [shape: f32[2,4,16,16], index: 0, kind: input, shape index: {}]
  %s1 = inlined_call_operand.hbm [shape: f32[2,4,16,16], index: 1, kind: input, shape index: {}]
  %s2 = inlined_call_operand.hbm [shape: f32[16,64], index: 2, kind: input, shape index: {}]
  %s3 = inlined_call_operand.hbm [shape: f32[2,1,8,128], index: 3, kind: output, shape index: {}]
  %s4 = sld [smem:[#allocation0]]
  $region57: #{tpu_custom_call.1} parent=0
    _
  %s6 = ssub.s32 1, %s4
  %s7 = scalar_select 0, %s6, %s4
  $region1: #{tpu_custom_call.1} parent=0
    #allocation2 [shape = 'u8[65536]{0}', space=vmem, size = 0x10000, scoped, tag = 'input window, operand 0']
    #allocation3 [shape = 's32[2]{0}', space=sflag, size = 0x8, scoped, tag = 'scoped memory for tpu_custom_call.1']
    #allocation4 [shape = 's32[2]{0}', space=sflag, size = 0x8, scoped, tag = 'scoped memory for tpu_custom_call.1']
    #allocation5 [shape = 'u8[65536]{0}', space=vmem, size = 0x10000, scoped, tag = 'input window, operand 1']
    #allocation6 [shape = 's32[2]{0}', space=sflag, size = 0x8, scoped, tag = 'scoped memory for tpu_custom_call.1']
    #allocation7 [shape = 'u8[8192]{0}', space=vmem, size = 0x2000, scoped, tag = 'input window, operand 2, single buffered']
    #allocation8 [shape = 'u8[8192]{0}', space=vmem, size = 0x2000, scoped, tag = 'output window, operand 0']
    %8 = vsyncpa [#allocation3], 0
    %s9 = scalar_lea.sflag [#allocation3], 1
    %10 = vsyncpa %s9, 0
    %11 = vsyncpa [#allocation6], 0
    %s12 = scalar_lea.sflag [#allocation6], 1
    %13 = vsyncpa %s12, 0
    %14 = vsyncpa [#allocation4], 0
    %s15 = scalar_lea.sflag [#allocation4], 1
    %16 = vsyncpa %s15, 0
    loop: start=0, step=1, limit=4
    $region2: #{tpu_custom_call.1} parent=1 // loop_pre_header
      _
    $region3: #{tpu_custom_call.1} parent=1 // loop_header
      %s18 = sphi 0, %s22
      %p19 = scmp.ge.s32.totalorder %s18, 4
      %s25 = sphi 0, %s37
      %s26 = sphi 0, %s33
      %s27 = sphi 0, %s25
      %s28 = sphi 0, %s26
      %s29 = sphi 0, %s27
      %s30 = sphi 0, %s28
      %s42 = sphi 0, %s44
      %s45 = sphi 0, %s42
      %s46 = sphi 0, %s45
      %s62 = sphi 0, %s46
      %s70 = sphi 0, %s72
      %s73 = sphi 0, %s70
      %s74 = sphi 0, %s73
      %s90 = sphi 0, %s74
      %s94 = sphi 0, %s94
      %s96 = sphi 0, %s94
      %s97 = sphi 0, %s96
      %s111 = sphi 0, %s97
      %s119 = sphi 0, %s121
      %s122 = sphi 0, %s119
      %s123 = sphi 0, %s122
      %s139 = sphi 0, %s123
    $region4: #{tpu_custom_call.1} parent=1 // loop_header_branch
      %21 = sbr.rel (%p19) target = $region8
    $region5: #{tpu_custom_call.1} parent=1 // loop_body
      %s23 = ssub.s32 %s18, 1
      %s24 = ssub.s32 %s18, 2
      %s31 = sadd.s32 1, %s26
      %p32 = scmp.ge.s32.totalorder %s31, 1
      %s33 = scalar_select %p32, 0, %s31
      %s34 = sadd.s32 1, %s25
      %s35 = scalar_select %p32, %s34, %s25
      %p36 = scmp.ge.s32.totalorder %s35, 2
      %s37 = scalar_select %p36, 0, %s35
      %s38 = ssub.s32 %s25, %s37
      %s39 = ssub.s32 %s26, %s33
      %s40 = sor.u32 %s38, %s39
      %p41 = scmp.eq.s32.totalorder %s40, 0
      %s43 = sadd.s32 %s42, 1
      %s44 = scalar_select %p41, %s42, %s43
      %p47 = pneg %p41
      %p48 = scmp.eq.s32.totalorder %s18, 1
      %p49 = por %p47, %p48
      %p50 = scmp.ne.s32.totalorder %s42, %s45
      %p51 = scmp.eq.s32.totalorder %s18, 0
      %p52 = por %p50, %p51
      %p53 = scmp.ne.s32.totalorder %s42, %s45
      %p54 = scmp.eq.s32.totalorder %s23, 1
      %p55 = por %p53, %p54
      %p56 = scmp.ne.s32.totalorder %s45, %s46
      %p57 = scmp.eq.s32.totalorder %s23, 0
      %p58 = por %p56, %p57
      %p59 = scmp.ne.s32.totalorder %s45, %s46
      %p60 = scmp.eq.s32.totalorder %s24, 1
      %p61 = por %p59, %p60
      %p63 = scmp.ne.s32.totalorder %s46, %s62
      %p64 = scmp.eq.s32.totalorder %s24, 0
      %p65 = por %p63, %p64
      %s66 = ssub.s32 %s25, %s37
      %s67 = ssub.s32 %s26, %s33
      %s68 = sor.u32 %s66, %s67
      %p69 = scmp.eq.s32.totalorder %s68, 0
      %s71 = sadd.s32 %s70, 1
      %s72 = scalar_select %p69, %s70, %s71
      %p75 = pneg %p69
      %p76 = scmp.eq.s32.totalorder %s18, 1
      %p77 = por %p75, %p76
      %p78 = scmp.ne.s32.totalorder %s70, %s73
      %p79 = scmp.eq.s32.totalorder %s18, 0
      %p80 = por %p78, %p79
      %p81 = scmp.ne.s32.totalorder %s70, %s73
      %p82 = scmp.eq.s32.totalorder %s23, 1
      %p83 = por %p81, %p82
      %p84 = scmp.ne.s32.totalorder %s73, %s74
      %p85 = scmp.eq.s32.totalorder %s23, 0
      %p86 = por %p84, %p85
      %p87 = scmp.ne.s32.totalorder %s73, %s74
      %p88 = scmp.eq.s32.totalorder %s24, 1
      %p89 = por %p87, %p88
      %p91 = scmp.ne.s32.totalorder %s74, %s90
      %p92 = scmp.eq.s32.totalorder %s24, 0
      %p93 = por %p91, %p92
      %s95 = sadd.s32 %s94, 1
      %p98 = scmp.eq.s32.totalorder %s18, 1
      %p99 = scmp.ne.s32.totalorder %s94, %s96
      %p100 = scmp.eq.s32.totalorder %s18, 0
      %p101 = por %p99, %p100
      %p102 = scmp.ne.s32.totalorder %s94, %s96
      %p103 = scmp.eq.s32.totalorder %s23, 1
      %p104 = por %p102, %p103
      %p105 = scmp.ne.s32.totalorder %s96, %s97
      %p106 = scmp.eq.s32.totalorder %s23, 0
      %p107 = por %p105, %p106
      %p108 = scmp.ne.s32.totalorder %s96, %s97
      %p109 = scmp.eq.s32.totalorder %s24, 1
      %p110 = por %p108, %p109
      %p112 = scmp.ne.s32.totalorder %s97, %s111
      %p113 = scmp.eq.s32.totalorder %s24, 0
      %p114 = por %p112, %p113
      %s115 = ssub.s32 %s25, %s37
      %s116 = ssub.s32 %s26, %s33
      %s117 = sor.u32 %s115, %s116
      %p118 = scmp.eq.s32.totalorder %s117, 0
      %s120 = sadd.s32 %s119, 1
      %s121 = scalar_select %p118, %s119, %s120
      %p124 = pneg %p118
      %p125 = scmp.eq.s32.totalorder %s18, 1
      %p126 = por %p124, %p125
      %p127 = scmp.ne.s32.totalorder %s119, %s122
      %p128 = scmp.eq.s32.totalorder %s18, 0
      %p129 = por %p127, %p128
      %p130 = scmp.ne.s32.totalorder %s119, %s122
      %p131 = scmp.eq.s32.totalorder %s23, 1
      %p132 = por %p130, %p131
      %p133 = scmp.ne.s32.totalorder %s122, %s123
      %p134 = scmp.eq.s32.totalorder %s23, 0
      %p135 = por %p133, %p134
      %p136 = scmp.ne.s32.totalorder %s122, %s123
      %p137 = scmp.eq.s32.totalorder %s24, 1
      %p138 = por %p136, %p137
      %p140 = scmp.ne.s32.totalorder %s123, %s139
      %p141 = scmp.eq.s32.totalorder %s24, 0
      %p142 = por %p140, %p141
      %p143 = scmp.le.s32.totalorder 1, %s18
      %p144 = scmp.lt.s32.totalorder %s18, 3
      %p145 = pnand %p143, %p144
      %p146 = pneg %p145
      // Predicated region
      $region9: #{tpu_custom_call.1} parent=5 // pred_check
        _
      $region10: #{tpu_custom_call.1} parent=5 // pred_check_branch
        %148 = sbr.rel (%p145) target = $region12
      $region11: #{tpu_custom_call.1} parent=5 // pred_region
        %s149 = ssub.s32 %s18, 1
        // Predicated region
        $region13: #{tpu_custom_call.1} parent=11 // pred_check
          %p150 = pneg %p107
        $region14: #{tpu_custom_call.1} parent=11 // pred_check_branch
          %152 = sbr.rel (%p150) target = $region16
        $region15: #{tpu_custom_call.1} parent=11 // pred_region
          %s154 = ssub.s32 256, 256
          %155 = vsyncadd [#allocation6], %s154
          %s156 = sshll.u32 [#allocation7], 4
          %s157 = int_to_ptr.vmem [resolvable:$true] %s156
          %162 = dma.hbm_to_vmem [thread:$0]  %s2, 256, %s157, [#allocation6], 128, 128, 8
        $region16: #{tpu_custom_call.1} parent=11 // pred_fallthru
          _
      $region12: #{tpu_custom_call.1} parent=5 // pred_fallthru
        _
      %p163 = scmp.lt.s32.totalorder %s18, 2
      // Predicated region
      $region17: #{tpu_custom_call.1} parent=5 // pred_check
        %p164 = pneg %p163
      $region18: #{tpu_custom_call.1} parent=5 // pred_check_branch
        %166 = sbr.rel (%p164) target = $region20
      $region19: #{tpu_custom_call.1} parent=5 // pred_region
        // Predicated region
        $region21: #{tpu_custom_call.1} parent=19 // pred_check
          %p167 = pneg %p52
        $region22: #{tpu_custom_call.1} parent=19 // pred_check_branch
          %169 = sbr.rel (%p167) target = $region24
        $region23: #{tpu_custom_call.1} parent=19 // pred_region
          %s170 = sand.u32 %s42, 1
          %s171 = scalar_lea.sflag [#allocation3], %s170
          %s172 = sand.u32 %s42, 1
          %s173 = smul.addr %s172, 64
          %s174 = scalar_lea.vmem [#allocation2], %s173
          %s175 = smul.u32 4, %s26
          %s177 = ssub.s32 1024, 1024
          %178 = vsyncadd %s171, %s177
          %s179 = smul.addr %s175, 2
          %s180 = smul.addr %s25, 8
          %s181 = sadd.s32 %s179, %s180
          %s182 = smul.addr %s181, 128
          %s183 = scalar_lea.hbm %s0, %s182
          %s184 = sshll.u32 %s174, 4
          %s185 = int_to_ptr.vmem [resolvable:$true] %s184
          %190 = dma.hbm_to_vmem [thread:$0]  %s183, 1024, %s185, %s171, 128, 128, 8
        $region24: #{tpu_custom_call.1} parent=19 // pred_fallthru
          _
        // Predicated region
        $region25: #{tpu_custom_call.1} parent=19 // pred_check
          %p191 = pneg %p80
        $region26: #{tpu_custom_call.1} parent=19 // pred_check_branch
          %193 = sbr.rel (%p191) target = $region28
        $region27: #{tpu_custom_call.1} parent=19 // pred_region
          %s194 = sand.u32 %s18, 1
          %s195 = scalar_lea.sflag [#allocation6], %s194
          %s196 = sand.u32 %s70, 1
          %s197 = smul.addr %s196, 64
          %s198 = scalar_lea.vmem [#allocation5], %s197
          %s199 = smul.u32 4, %s26
          %s201 = ssub.s32 1024, 1024
          %202 = vsyncadd %s195, %s201
          %s203 = smul.addr %s199, 2
          %s204 = smul.addr %s25, 8
          %s205 = sadd.s32 %s203, %s204
          %s206 = smul.addr %s205, 128
          %s207 = scalar_lea.hbm %s1, %s206
          %s208 = sshll.u32 %s198, 4
          %s209 = int_to_ptr.vmem [resolvable:$true] %s208
          %214 = dma.hbm_to_vmem [thread:$0]  %s207, 1024, %s209, %s195, 128, 128, 8
        $region28: #{tpu_custom_call.1} parent=19 // pred_fallthru
          _
      $region20: #{tpu_custom_call.1} parent=5 // pred_fallthru
        _
      %p215 = scmp.le.s32.totalorder 1, %s18
      %p216 = scmp.lt.s32.totalorder %s18, 3
      %p217 = pnand %p215, %p216
      %p218 = pneg %p217
      // Predicated region
      $region29: #{tpu_custom_call.1} parent=5 // pred_check
        _
      $region30: #{tpu_custom_call.1} parent=5 // pred_check_branch
        %220 = sbr.rel (%p217) target = $region32
      $region31: #{tpu_custom_call.1} parent=5 // pred_region
        %s221 = ssub.s32 %s18, 1
        %s222 = sand.u32 %s45, 1
        %s223 = scalar_lea.sflag [#allocation3], %s222
        %s224 = sand.u32 %s45, 1
        %s225 = smul.addr %s224, 64
        %s226 = scalar_lea.vmem [#allocation2], %s225
        // Predicated region
        $region33: #{tpu_custom_call.1} parent=31 // pred_check
          %p227 = pneg %p58
        $region34: #{tpu_custom_call.1} parent=31 // pred_check_branch
          %229 = sbr.rel (%p227) target = $region36
        $region35: #{tpu_custom_call.1} parent=31 // pred_region
          %230 = dma.done %s223, 1024
        $region36: #{tpu_custom_call.1} parent=31 // pred_fallthru
          _
        %s231 = sand.u32 %s23, 1
        %s232 = scalar_lea.sflag [#allocation6], %s231
        %s233 = sand.u32 %s73, 1
        %s234 = smul.addr %s233, 64
        %s235 = scalar_lea.vmem [#allocation5], %s234
        // Predicated region
        $region37: #{tpu_custom_call.1} parent=31 // pred_check
          %p236 = pneg %p86
        $region38: #{tpu_custom_call.1} parent=31 // pred_check_branch
          %238 = sbr.rel (%p236) target = $region40
        $region39: #{tpu_custom_call.1} parent=31 // pred_region
          %239 = dma.done %s232, 1024
        $region40: #{tpu_custom_call.1} parent=31 // pred_fallthru
          _
        // Predicated region
        $region41: #{tpu_custom_call.1} parent=31 // pred_check
          %p240 = pneg %p107
        $region42: #{tpu_custom_call.1} parent=31 // pred_check_branch
          %242 = sbr.rel (%p240) target = $region44
        $region43: #{tpu_custom_call.1} parent=31 // pred_region
          %243 = dma.done [#allocation6], 256
        $region44: #{tpu_custom_call.1} parent=31 // pred_fallthru
          _
        %s244 = sand.u32 %s45, 1
        %s245 = scalar_lea.sflag [#allocation3], %s244
        %s246 = sand.u32 %s45, 1
        %s247 = smul.addr %s246, 64
        %s248 = scalar_lea.vmem [#allocation2], %s247
        %p249 = pneg %p58
        %p250 = pneg %p55
        %s251 = sand.u32 %s23, 1
        %s252 = scalar_lea.sflag [#allocation6], %s251
        %s253 = sand.u32 %s73, 1
        %s254 = smul.addr %s253, 64
        %s255 = scalar_lea.vmem [#allocation5], %s254
        %p256 = pneg %p86
        %p257 = pneg %p83
        %p258 = pneg %p107
        %p259 = pneg %p104
        %p260 = pneg %p135
        %p261 = pneg %p132
        %s262 = sand.u32 %s122, 1
        %s263 = scalar_lea.sflag [#allocation4], %s262
        %s264 = sand.u32 %s122, 1
        %s265 = smul.addr %s264, 8
        %s266 = scalar_lea.vmem [#allocation8], %s265
        %s267 = smul.u32 4, %s28
        %s268 = smul.u32 4, %s28
        %v269 = vld [vmem:[%s226] sm:$0xff]
        %v270 = vld [vmem:[%s226 + $0x8] sm:$0xff]
        %v271 = vld [vmem:[%s226 + $0x10] sm:$0xff]
        %v272 = vld [vmem:[%s226 + $0x18] sm:$0xff]
        %v273 = vld [vmem:[%s226 + $0x20] sm:$0xff]
        %v274 = vld [vmem:[%s226 + $0x28] sm:$0xff]
        %v275 = vld [vmem:[%s226 + $0x30] sm:$0xff]
        %v276 = vld [vmem:[%s226 + $0x38] sm:$0xff]
        %v277 = vld [vmem:[%s235] sm:$0xff]
        %v278 = vld [vmem:[%s235 + $0x8] sm:$0xff]
        %v279 = vld [vmem:[%s235 + $0x10] sm:$0xff]
        %v280 = vld [vmem:[%s235 + $0x18] sm:$0xff]
        %v281 = vld [vmem:[%s235 + $0x20] sm:$0xff]
        %v282 = vld [vmem:[%s235 + $0x28] sm:$0xff]
        %v283 = vld [vmem:[%s235 + $0x30] sm:$0xff]
        %v284 = vld [vmem:[%s235 + $0x38] sm:$0xff]
        %v285 = vld [vmem:[#allocation7] sm:$0xff]
        %v286 = vld [vmem:[#allocation7 + $0x8] sm:$0xff]
        %vm287 = vcmask 130048
        %v289 = vsel %vm287, %v277, 0
        %v292 = vsel %vm287, %v278, 0
        %v295 = vsel %vm287, %v279, 0
        %v298 = vsel %vm287, %v280, 0
        %v301 = vsel %vm287, %v281, 0
        %v304 = vsel %vm287, %v282, 0
        %v307 = vsel %vm287, %v283, 0
        %v310 = vsel %vm287, %v284, 0
        %312 = vmatprep.subr.mxu0 0.0
        %v313 = vand.u32 %v285, 4294901760
        %314 = vmatpush1.msra.mxu0 %v313
        %315 = vmatprep.subr.mxu0 0.0
        %v316 = vand.u32 %v286, 4294901760
        %317 = vmatpush1.msra.mxu0 %v316
        %318 = vmatprep.subr.mxu0 0.0
        %319 = vmatpush1.msra.mxu0 0.0
        %320 = vmatprep.subr.mxu0 0.0
        %321 = vmatpush1.msra.mxu0 0.0
        %322 = vmatprep.subr.mxu0 0.0
        %323 = vmatpush1.msra.mxu0 0.0
        %324 = vmatprep.subr.mxu0 0.0
        %325 = vmatpush1.msra.mxu0 0.0
        %326 = vmatprep.subr.mxu0 0.0
        %327 = vmatpush1.msra.mxu0 0.0
        %328 = vmatprep.subr.mxu0 0.0
        %329 = vmatpush1.msra.mxu0 0.0
        %330 = vmatprep.subr.mxu0 0.0
        %331 = vmatpush1.msra.mxu0 0.0
        %332 = vmatprep.subr.mxu0 0.0
        %333 = vmatpush1.msra.mxu0 0.0
        %334 = vmatprep.subr.mxu0 0.0
        %335 = vmatpush1.msra.mxu0 0.0
        %336 = vmatprep.subr.mxu0 0.0
        %337 = vmatpush1.msra.mxu0 0.0
        %338 = vmatprep.subr.mxu0 0.0
        %339 = vmatpush1.msra.mxu0 0.0
        %340 = vmatprep.subr.mxu0 0.0
        %341 = vmatpush1.msra.mxu0 0.0
        %342 = vmatprep.subr.mxu0 0.0
        %343 = vmatpush1.msra.mxu0 0.0
        %344 = vmatprep.subr.mxu0 0.0
        %345 = vmatpush1.msra.mxu0 0.0
        %346 = vmatprep.subr.mxu0 0.0
        %347 = vmatpush1.msra.mxu0 0.0
        %348 = vmatprep.subr.mxu0 0.0
        %349 = vmatpush1.msra.mxu0 0.0
        %350 = vmatprep.subr.mxu0 0.0
        %351 = vmatpush1.msra.mxu0 0.0
        %352 = vmatprep.subr.mxu0 0.0
        %353 = vmatpush1.msra.mxu0 0.0
        %354 = vmatprep.subr.mxu0 0.0
        %355 = vmatpush1.msra.mxu0 0.0
        %356 = vmatprep.subr.mxu0 0.0
        %357 = vmatpush1.msra.mxu0 0.0
        %358 = vmatprep.subr.mxu0 0.0
        %359 = vmatpush1.msra.mxu0 0.0
        %360 = vmatprep.subr.mxu0 0.0
        %361 = vmatpush1.msra.mxu0 0.0
        %362 = vmatprep.subr.mxu0 0.0
        %363 = vmatpush1.msra.mxu0 0.0
        %364 = vmatprep.subr.mxu0 0.0
        %365 = vmatpush1.msra.mxu0 0.0
        %366 = vmatprep.subr.mxu0 0.0
        %367 = vmatpush1.msra.mxu0 0.0
        %368 = vmatprep.subr.mxu0 0.0
        %369 = vmatpush1.msra.mxu0 0.0
        %370 = vmatprep.subr.mxu0 0.0
        %371 = vmatpush1.msra.mxu0 0.0
        %372 = vmatprep.subr.mxu0 0.0
        %373 = vmatpush1.msra.mxu0 0.0
        %374 = vmatprep.subr.mxu0 0.0
        %375 = vmatpush1.msra.mxu0 0.0
        %376 = vmatprep.subr.mxu0 0.0
        %377 = vmatpush1.msra.mxu0 0.0
        %378 = vmatprep.mubr.f32.mxu0 0.0
        %v379 = vand.u32 %v289, 4294901760
        %v380 = vsub.f32 %v289, %v379
        %v381 = vand.u32 %v380, 4294901760
        %v382 = vsub.f32 %v380, %v381
        %v383 = vand.u32 %v382, 4294901760
        %384 = vmatmul.mubr.f32.gmra.mrb[0].mxu0 %v383
        %v385 = vpop.f32.mrb[0].mxu0
        %v386 = vadd.f32 0.0, %v385
        %v387 = vpop.f32.mrb[0].mxu0
        %388 = vmatprep.mubr.f32.mxu0 0.0
        %v389 = vand.u32 %v292, 4294901760
        %v390 = vsub.f32 %v292, %v389
        %v391 = vand.u32 %v390, 4294901760
        %v392 = vsub.f32 %v390, %v391
        %v393 = vand.u32 %v392, 4294901760
        %394 = vmatmul.mubr.f32.gmra.mrb[0].mxu0 %v393
        %v395 = vpop.f32.mrb[0].mxu0
        %v396 = vadd.f32 0.0, %v395
        %v397 = vpop.f32.mrb[0].mxu0
        %398 = vmatprep.mubr.f32.mxu0 0.0
        %v399 = vand.u32 %v295, 4294901760
        %v400 = vsub.f32 %v295, %v399
        %v401 = vand.u32 %v400, 4294901760
        %v402 = vsub.f32 %v400, %v401
        %v403 = vand.u32 %v402, 4294901760
        %404 = vmatmul.mubr.f32.gmra.mrb[0].mxu0 %v403
        %v405 = vpop.f32.mrb[0].mxu0
        %v406 = vadd.f32 0.0, %v405
        %v407 = vpop.f32.mrb[0].mxu0
        %408 = vmatprep.mubr.f32.mxu0 0.0
        %v409 = vand.u32 %v298, 4294901760
        %v410 = vsub.f32 %v298, %v409
        %v411 = vand.u32 %v410, 4294901760
        %v412 = vsub.f32 %v410, %v411
        %v413 = vand.u32 %v412, 4294901760
        %414 = vmatmul.mubr.f32.gmra.mrb[0].mxu0 %v413
        %v415 = vpop.f32.mrb[0].mxu0
        %v416 = vadd.f32 0.0, %v415
        %v417 = vpop.f32.mrb[0].mxu0
        %418 = vmatprep.mubr.f32.mxu0 0.0
        %v419 = vand.u32 %v301, 4294901760
        %v420 = vsub.f32 %v301, %v419
        %v421 = vand.u32 %v420, 4294901760
        %v422 = vsub.f32 %v420, %v421
        %v423 = vand.u32 %v422, 4294901760
        %424 = vmatmul.mubr.f32.gmra.mrb[0].mxu0 %v423
        %v425 = vpop.f32.mrb[0].mxu0
        %v426 = vadd.f32 0.0, %v425
        %v427 = vpop.f32.mrb[0].mxu0
        %428 = vmatprep.mubr.f32.mxu0 0.0
        %v429 = vand.u32 %v304, 4294901760
        %v430 = vsub.f32 %v304, %v429
        %v431 = vand.u32 %v430, 4294901760
        %v432 = vsub.f32 %v430, %v431
        %v433 = vand.u32 %v432, 4294901760
        %434 = vmatmul.mubr.f32.gmra.mrb[0].mxu0 %v433
        %v435 = vpop.f32.mrb[0].mxu0
        %v436 = vadd.f32 0.0, %v435
        %v437 = vpop.f32.mrb[0].mxu0
        %438 = vmatprep.mubr.f32.mxu0 0.0
        %v439 = vand.u32 %v307, 4294901760
        %v440 = vsub.f32 %v307, %v439
        %v441 = vand.u32 %v440, 4294901760
        %v442 = vsub.f32 %v440, %v441
        %v443 = vand.u32 %v442, 4294901760
        %444 = vmatmul.mubr.f32.gmra.mrb[0].mxu0 %v443
        %v445 = vpop.f32.mrb[0].mxu0
        %v446 = vadd.f32 0.0, %v445
        %v447 = vpop.f32.mrb[0].mxu0
        %448 = vmatprep.mubr.f32.mxu0 0.0
        %v449 = vand.u32 %v310, 4294901760
        %v450 = vsub.f32 %v310, %v449
        %v451 = vand.u32 %v450, 4294901760
        %v452 = vsub.f32 %v450, %v451
        %v453 = vand.u32 %v452, 4294901760
        %454 = vmatmul.mubr.f32.gmra.mrb[0].mxu0 %v453
        %v455 = vpop.f32.mrb[0].mxu0
        %v456 = vadd.f32 0.0, %v455
        %v457 = vpop.f32.mrb[0].mxu0
        %458 = vdwg.mxu0
        %459 = vmatprep.subr.mxu0 0.0
        %v460 = vand.u32 %v285, 4294901760
        %v461 = vsub.f32 %v285, %v460
        %v462 = vand.u32 %v461, 4294901760
        %v463 = vsub.f32 %v461, %v462
        %v464 = vand.u32 %v463, 4294901760
        %465 = vmatpush1.msra.mxu0 %v464
        %466 = vmatprep.subr.mxu0 0.0
        %v467 = vand.u32 %v286, 4294901760
        %v468 = vsub.f32 %v286, %v467
        %v469 = vand.u32 %v468, 4294901760
        %v470 = vsub.f32 %v468, %v469
        %v471 = vand.u32 %v470, 4294901760
        %472 = vmatpush1.msra.mxu0 %v471
        %473 = vmatprep.subr.mxu0 0.0
        %474 = vmatpush1.msra.mxu0 0.0
        %475 = vmatprep.subr.mxu0 0.0
        %476 = vmatpush1.msra.mxu0 0.0
        %477 = vmatprep.subr.mxu0 0.0
        %478 = vmatpush1.msra.mxu0 0.0
        %479 = vmatprep.subr.mxu0 0.0
        %480 = vmatpush1.msra.mxu0 0.0
        %481 = vmatprep.subr.mxu0 0.0
        %482 = vmatpush1.msra.mxu0 0.0
        %483 = vmatprep.subr.mxu0 0.0
        %484 = vmatpush1.msra.mxu0 0.0
        %485 = vmatprep.subr.mxu0 0.0
        %486 = vmatpush1.msra.mxu0 0.0
        %487 = vmatprep.subr.mxu0 0.0
        %488 = vmatpush1.msra.mxu0 0.0
        %489 = vmatprep.subr.mxu0 0.0
        %490 = vmatpush1.msra.mxu0 0.0
        %491 = vmatprep.subr.mxu0 0.0
        %492 = vmatpush1.msra.mxu0 0.0
        %493 = vmatprep.subr.mxu0 0.0
        %494 = vmatpush1.msra.mxu0 0.0
        %495 = vmatprep.subr.mxu0 0.0
        %496 = vmatpush1.msra.mxu0 0.0
        %497 = vmatprep.subr.mxu0 0.0
        %498 = vmatpush1.msra.mxu0 0.0
        %499 = vmatprep.subr.mxu0 0.0
        %500 = vmatpush1.msra.mxu0 0.0
        %501 = vmatprep.subr.mxu0 0.0
        %502 = vmatpush1.msra.mxu0 0.0
        %503 = vmatprep.subr.mxu0 0.0
        %504 = vmatpush1.msra.mxu0 0.0
        %505 = vmatprep.subr.mxu0 0.0
        %506 = vmatpush1.msra.mxu0 0.0
        %507 = vmatprep.subr.mxu0 0.0
        %508 = vmatpush1.msra.mxu0 0.0
        %509 = vmatprep.subr.mxu0 0.0
        %510 = vmatpush1.msra.mxu0 0.0
        %511 = vmatprep.subr.mxu0 0.0
        %512 = vmatpush1.msra.mxu0 0.0
        %513 = vmatprep.subr.mxu0 0.0
        %514 = vmatpush1.msra.mxu0 0.0
        %515 = vmatprep.subr.mxu0 0.0
        %516 = vmatpush1.msra.mxu0 0.0
        %517 = vmatprep.subr.mxu0 0.0
        %518 = vmatpush1.msra.mxu0 0.0
        %519 = vmatprep.subr.mxu0 0.0
        %520 = vmatpush1.msra.mxu0 0.0
        %521 = vmatprep.subr.mxu0 0.0
        %522 = vmatpush1.msra.mxu0 0.0
        %523 = vmatprep.subr.mxu0 0.0
        %524 = vmatpush1.msra.mxu0 0.0
        %525 = vmatprep.subr.mxu0 0.0
        %526 = vmatpush1.msra.mxu0 0.0
        %527 = vmatprep.subr.mxu0 0.0
        %528 = vmatpush1.msra.mxu0 0.0
        %529 = vmatprep.subr.mxu0 0.0
        %530 = vmatpush1.msra.mxu0 0.0
        %531 = vmatprep.subr.mxu0 0.0
        %532 = vmatpush1.msra.mxu0 0.0
        %533 = vmatprep.mubr.f32.mxu0 0.0
        %v534 = vand.u32 %v289, 4294901760
        %535 = vmatmul.mubr.f32.gmra.mrb[0].mxu0 %v534
        %v536 = vpop.f32.mrb[0].mxu0
        %v537 = vadd.f32 %v386, %v536
        %v538 = vpop.f32.mrb[0].mxu0
        %539 = vmatprep.mubr.f32.mxu0 0.0
        %v540 = vand.u32 %v292, 4294901760
        %541 = vmatmul.mubr.f32.gmra.mrb[0].mxu0 %v540
        %v542 = vpop.f32.mrb[0].mxu0
        %v543 = vadd.f32 %v396, %v542
        %v544 = vpop.f32.mrb[0].mxu0
        %545 = vmatprep.mubr.f32.mxu0 0.0
        %v546 = vand.u32 %v295, 4294901760
        %547 = vmatmul.mubr.f32.gmra.mrb[0].mxu0 %v546
        %v548 = vpop.f32.mrb[0].mxu0
        %v549 = vadd.f32 %v406, %v548
        %v550 = vpop.f32.mrb[0].mxu0
        %551 = vmatprep.mubr.f32.mxu0 0.0
        %v552 = vand.u32 %v298, 4294901760
        %553 = vmatmul.mubr.f32.gmra.mrb[0].mxu0 %v552
        %v554 = vpop.f32.mrb[0].mxu0
        %v555 = vadd.f32 %v416, %v554
        %v556 = vpop.f32.mrb[0].mxu0
        %557 = vmatprep.mubr.f32.mxu0 0.0
        %v558 = vand.u32 %v301, 4294901760
        %559 = vmatmul.mubr.f32.gmra.mrb[0].mxu0 %v558
        %v560 = vpop.f32.mrb[0].mxu0
        %v561 = vadd.f32 %v426, %v560
        %v562 = vpop.f32.mrb[0].mxu0
        %563 = vmatprep.mubr.f32.mxu0 0.0
        %v564 = vand.u32 %v304, 4294901760
        %565 = vmatmul.mubr.f32.gmra.mrb[0].mxu0 %v564
        %v566 = vpop.f32.mrb[0].mxu0
        %v567 = vadd.f32 %v436, %v566
        %v568 = vpop.f32.mrb[0].mxu0
        %569 = vmatprep.mubr.f32.mxu0 0.0
        %v570 = vand.u32 %v307, 4294901760
        %571 = vmatmul.mubr.f32.gmra.mrb[0].mxu0 %v570
        %v572 = vpop.f32.mrb[0].mxu0
        %v573 = vadd.f32 %v446, %v572
        %v574 = vpop.f32.mrb[0].mxu0
        %575 = vmatprep.mubr.f32.mxu0 0.0
        %v576 = vand.u32 %v310, 4294901760
        %577 = vmatmul.mubr.f32.gmra.mrb[0].mxu0 %v576
        %v578 = vpop.f32.mrb[0].mxu0
        %v579 = vadd.f32 %v456, %v578
        %v580 = vpop.f32.mrb[0].mxu0
        %581 = vdwg.mxu0
        %582 = vmatprep.subr.mxu0 0.0
        %v583 = vand.u32 %v285, 4294901760
        %v584 = vsub.f32 %v285, %v583
        %585 = vmatpush1.msra.mxu0 %v584
        %586 = vmatprep.subr.mxu0 0.0
        %v587 = vand.u32 %v286, 4294901760
        %v588 = vsub.f32 %v286, %v587
        %589 = vmatpush1.msra.mxu0 %v588
        %590 = vmatprep.subr.mxu0 0.0
        %591 = vmatpush1.msra.mxu0 0.0
        %592 = vmatprep.subr.mxu0 0.0
        %593 = vmatpush1.msra.mxu0 0.0
        %594 = vmatprep.subr.mxu0 0.0
        %595 = vmatpush1.msra.mxu0 0.0
        %596 = vmatprep.subr.mxu0 0.0
        %597 = vmatpush1.msra.mxu0 0.0
        %598 = vmatprep.subr.mxu0 0.0
        %599 = vmatpush1.msra.mxu0 0.0
        %600 = vmatprep.subr.mxu0 0.0
        %601 = vmatpush1.msra.mxu0 0.0
        %602 = vmatprep.subr.mxu0 0.0
        %603 = vmatpush1.msra.mxu0 0.0
        %604 = vmatprep.subr.mxu0 0.0
        %605 = vmatpush1.msra.mxu0 0.0
        %606 = vmatprep.subr.mxu0 0.0
        %607 = vmatpush1.msra.mxu0 0.0
        %608 = vmatprep.subr.mxu0 0.0
        %609 = vmatpush1.msra.mxu0 0.0
        %610 = vmatprep.subr.mxu0 0.0
        %611 = vmatpush1.msra.mxu0 0.0
        %612 = vmatprep.subr.mxu0 0.0
        %613 = vmatpush1.msra.mxu0 0.0
        %614 = vmatprep.subr.mxu0 0.0
        %615 = vmatpush1.msra.mxu0 0.0
        %616 = vmatprep.subr.mxu0 0.0
        %617 = vmatpush1.msra.mxu0 0.0
        %618 = vmatprep.subr.mxu0 0.0
        %619 = vmatpush1.msra.mxu0 0.0
        %620 = vmatprep.subr.mxu0 0.0
        %621 = vmatpush1.msra.mxu0 0.0
        %622 = vmatprep.subr.mxu0 0.0
        %623 = vmatpush1.msra.mxu0 0.0
        %624 = vmatprep.subr.mxu0 0.0
        %625 = vmatpush1.msra.mxu0 0.0
        %626 = vmatprep.subr.mxu0 0.0
        %627 = vmatpush1.msra.mxu0 0.0
        %628 = vmatprep.subr.mxu0 0.0
        %629 = vmatpush1.msra.mxu0 0.0
        %630 = vmatprep.subr.mxu0 0.0
        %631 = vmatpush1.msra.mxu0 0.0
        %632 = vmatprep.subr.mxu0 0.0
        %633 = vmatpush1.msra.mxu0 0.0
        %634 = vmatprep.subr.mxu0 0.0
        %635 = vmatpush1.msra.mxu0 0.0
        %636 = vmatprep.subr.mxu0 0.0
        %637 = vmatpush1.msra.mxu0 0.0
        %638 = vmatprep.subr.mxu0 0.0
        %639 = vmatpush1.msra.mxu0 0.0
        %640 = vmatprep.subr.mxu0 0.0
        %641 = vmatpush1.msra.mxu0 0.0
        %642 = vmatprep.subr.mxu0 0.0
        %643 = vmatpush1.msra.mxu0 0.0
        %644 = vmatprep.subr.mxu0 0.0
        %645 = vmatpush1.msra.mxu0 0.0
        %646 = vmatprep.subr.mxu0 0.0
        %647 = vmatpush1.msra.mxu0 0.0
        %648 = vmatprep.subr.mxu0 0.0
        %649 = vmatpush1.msra.mxu0 0.0
        %650 = vmatprep.mubr.f32.mxu0 0.0
        %v651 = vand.u32 %v289, 4294901760
        %v652 = vsub.f32 %v289, %v651
        %653 = vmatmul.mubr.f32.gmra.mrb[0].mxu0 %v652
        %v654 = vpop.f32.mrb[0].mxu0
        %v655 = vadd.f32 %v537, %v654
        %v656 = vpop.f32.mrb[0].mxu0
        %657 = vmatprep.mubr.f32.mxu0 0.0
        %v658 = vand.u32 %v292, 4294901760
        %v659 = vsub.f32 %v292, %v658
        %660 = vmatmul.mubr.f32.gmra.mrb[0].mxu0 %v659
        %v661 = vpop.f32.mrb[0].mxu0
        %v662 = vadd.f32 %v543, %v661
        %v663 = vpop.f32.mrb[0].mxu0
        %664 = vmatprep.mubr.f32.mxu0 0.0
        %v665 = vand.u32 %v295, 4294901760
        %v666 = vsub.f32 %v295, %v665
        %667 = vmatmul.mubr.f32.gmra.mrb[0].mxu0 %v666
        %v668 = vpop.f32.mrb[0].mxu0
        %v669 = vadd.f32 %v549, %v668
        %v670 = vpop.f32.mrb[0].mxu0
        %671 = vmatprep.mubr.f32.mxu0 0.0
        %v672 = vand.u32 %v298, 4294901760
        %v673 = vsub.f32 %v298, %v672
        %674 = vmatmul.mubr.f32.gmra.mrb[0].mxu0 %v673
        %v675 = vpop.f32.mrb[0].mxu0
        %v676 = vadd.f32 %v555, %v675
        %v677 = vpop.f32.mrb[0].mxu0
        %678 = vmatprep.mubr.f32.mxu0 0.0
        %v679 = vand.u32 %v301, 4294901760
        %v680 = vsub.f32 %v301, %v679
        %681 = vmatmul.mubr.f32.gmra.mrb[0].mxu0 %v680
        %v682 = vpop.f32.mrb[0].mxu0
        %v683 = vadd.f32 %v561, %v682
        %v684 = vpop.f32.mrb[0].mxu0
        %685 = vmatprep.mubr.f32.mxu0 0.0
        %v686 = vand.u32 %v304, 4294901760
        %v687 = vsub.f32 %v304, %v686
        %688 = vmatmul.mubr.f32.gmra.mrb[0].mxu0 %v687
        %v689 = vpop.f32.mrb[0].mxu0
        %v690 = vadd.f32 %v567, %v689
        %v691 = vpop.f32.mrb[0].mxu0
        %692 = vmatprep.mubr.f32.mxu0 0.0
        %v693 = vand.u32 %v307, 4294901760
        %v694 = vsub.f32 %v307, %v693
        %695 = vmatmul.mubr.f32.gmra.mrb[0].mxu0 %v694
        %v696 = vpop.f32.mrb[0].mxu0
        %v697 = vadd.f32 %v573, %v696
        %v698 = vpop.f32.mrb[0].mxu0
        %699 = vmatprep.mubr.f32.mxu0 0.0
        %v700 = vand.u32 %v310, 4294901760
        %v701 = vsub.f32 %v310, %v700
        %702 = vmatmul.mubr.f32.gmra.mrb[0].mxu0 %v701
        %v703 = vpop.f32.mrb[0].mxu0
        %v704 = vadd.f32 %v579, %v703
        %v705 = vpop.f32.mrb[0].mxu0
        %706 = vdwg.mxu0
        %707 = vmatprep.subr.mxu0 0.0
        %v708 = vand.u32 %v285, 4294901760
        %709 = vmatpush1.msra.mxu0 %v708
        %710 = vmatprep.subr.mxu0 0.0
        %v711 = vand.u32 %v286, 4294901760
        %712 = vmatpush1.msra.mxu0 %v711
        %713 = vmatprep.subr.mxu0 0.0
        %714 = vmatpush1.msra.mxu0 0.0
        %715 = vmatprep.subr.mxu0 0.0
        %716 = vmatpush1.msra.mxu0 0.0
        %717 = vmatprep.subr.mxu0 0.0
        %718 = vmatpush1.msra.mxu0 0.0
        %719 = vmatprep.subr.mxu0 0.0
        %720 = vmatpush1.msra.mxu0 0.0
        %721 = vmatprep.subr.mxu0 0.0
        %722 = vmatpush1.msra.mxu0 0.0
        %723 = vmatprep.subr.mxu0 0.0
        %724 = vmatpush1.msra.mxu0 0.0
        %725 = vmatprep.subr.mxu0 0.0
        %726 = vmatpush1.msra.mxu0 0.0
        %727 = vmatprep.subr.mxu0 0.0
        %728 = vmatpush1.msra.mxu0 0.0
        %729 = vmatprep.subr.mxu0 0.0
        %730 = vmatpush1.msra.mxu0 0.0
        %731 = vmatprep.subr.mxu0 0.0
        %732 = vmatpush1.msra.mxu0 0.0
        %733 = vmatprep.subr.mxu0 0.0
        %734 = vmatpush1.msra.mxu0 0.0
        %735 = vmatprep.subr.mxu0 0.0
        %736 = vmatpush1.msra.mxu0 0.0
        %737 = vmatprep.subr.mxu0 0.0
        %738 = vmatpush1.msra.mxu0 0.0
        %739 = vmatprep.subr.mxu0 0.0
        %740 = vmatpush1.msra.mxu0 0.0
        %741 = vmatprep.subr.mxu0 0.0
        %742 = vmatpush1.msra.mxu0 0.0
        %743 = vmatprep.subr.mxu0 0.0
        %744 = vmatpush1.msra.mxu0 0.0
        %745 = vmatprep.subr.mxu0 0.0
        %746 = vmatpush1.msra.mxu0 0.0
        %747 = vmatprep.subr.mxu0 0.0
        %748 = vmatpush1.msra.mxu0 0.0
        %749 = vmatprep.subr.mxu0 0.0
        %750 = vmatpush1.msra.mxu0 0.0
        %751 = vmatprep.subr.mxu0 0.0
        %752 = vmatpush1.msra.mxu0 0.0
        %753 = vmatprep.subr.mxu0 0.0
        %754 = vmatpush1.msra.mxu0 0.0
        %755 = vmatprep.subr.mxu0 0.0
        %756 = vmatpush1.msra.mxu0 0.0
        %757 = vmatprep.subr.mxu0 0.0
        %758 = vmatpush1.msra.mxu0 0.0
        %759 = vmatprep.subr.mxu0 0.0
        %760 = vmatpush1.msra.mxu0 0.0
        %761 = vmatprep.subr.mxu0 0.0
        %762 = vmatpush1.msra.mxu0 0.0
        %763 = vmatprep.subr.mxu0 0.0
        %764 = vmatpush1.msra.mxu0 0.0
        %765 = vmatprep.subr.mxu0 0.0
        %766 = vmatpush1.msra.mxu0 0.0
        %767 = vmatprep.subr.mxu0 0.0
        %768 = vmatpush1.msra.mxu0 0.0
        %769 = vmatprep.subr.mxu0 0.0
        %770 = vmatpush1.msra.mxu0 0.0
        %771 = vmatprep.subr.mxu0 0.0
        %772 = vmatpush1.msra.mxu0 0.0
        %773 = vmatprep.mubr.f32.mxu0 0.0
        %v774 = vand.u32 %v289, 4294901760
        %v775 = vsub.f32 %v289, %v774
        %v776 = vand.u32 %v775, 4294901760
        %777 = vmatmul.mubr.f32.gmra.mrb[0].mxu0 %v776
        %v778 = vpop.f32.mrb[0].mxu0
        %v779 = vadd.f32 %v655, %v778
        %v780 = vpop.f32.mrb[0].mxu0
        %781 = vmatprep.mubr.f32.mxu0 0.0
        %v782 = vand.u32 %v292, 4294901760
        %v783 = vsub.f32 %v292, %v782
        %v784 = vand.u32 %v783, 4294901760
        %785 = vmatmul.mubr.f32.gmra.mrb[0].mxu0 %v784
        %v786 = vpop.f32.mrb[0].mxu0
        %v787 = vadd.f32 %v662, %v786
        %v788 = vpop.f32.mrb[0].mxu0
        %789 = vmatprep.mubr.f32.mxu0 0.0
        %v790 = vand.u32 %v295, 4294901760
        %v791 = vsub.f32 %v295, %v790
        %v792 = vand.u32 %v791, 4294901760
        %793 = vmatmul.mubr.f32.gmra.mrb[0].mxu0 %v792
        %v794 = vpop.f32.mrb[0].mxu0
        %v795 = vadd.f32 %v669, %v794
        %v796 = vpop.f32.mrb[0].mxu0
        %797 = vmatprep.mubr.f32.mxu0 0.0
        %v798 = vand.u32 %v298, 4294901760
        %v799 = vsub.f32 %v298, %v798
        %v800 = vand.u32 %v799, 4294901760
        %801 = vmatmul.mubr.f32.gmra.mrb[0].mxu0 %v800
        %v802 = vpop.f32.mrb[0].mxu0
        %v803 = vadd.f32 %v676, %v802
        %v804 = vpop.f32.mrb[0].mxu0
        %805 = vmatprep.mubr.f32.mxu0 0.0
        %v806 = vand.u32 %v301, 4294901760
        %v807 = vsub.f32 %v301, %v806
        %v808 = vand.u32 %v807, 4294901760
        %809 = vmatmul.mubr.f32.gmra.mrb[0].mxu0 %v808
        %v810 = vpop.f32.mrb[0].mxu0
        %v811 = vadd.f32 %v683, %v810
        %v812 = vpop.f32.mrb[0].mxu0
        %813 = vmatprep.mubr.f32.mxu0 0.0
        %v814 = vand.u32 %v304, 4294901760
        %v815 = vsub.f32 %v304, %v814
        %v816 = vand.u32 %v815, 4294901760
        %817 = vmatmul.mubr.f32.gmra.mrb[0].mxu0 %v816
        %v818 = vpop.f32.mrb[0].mxu0
        %v819 = vadd.f32 %v690, %v818
        %v820 = vpop.f32.mrb[0].mxu0
        %821 = vmatprep.mubr.f32.mxu0 0.0
        %v822 = vand.u32 %v307, 4294901760
        %v823 = vsub.f32 %v307, %v822
        %v824 = vand.u32 %v823, 4294901760
        %825 = vmatmul.mubr.f32.gmra.mrb[0].mxu0 %v824
        %v826 = vpop.f32.mrb[0].mxu0
        %v827 = vadd.f32 %v697, %v826
        %v828 = vpop.f32.mrb[0].mxu0
        %829 = vmatprep.mubr.f32.mxu0 0.0
        %v830 = vand.u32 %v310, 4294901760
        %v831 = vsub.f32 %v310, %v830
        %v832 = vand.u32 %v831, 4294901760
        %833 = vmatmul.mubr.f32.gmra.mrb[0].mxu0 %v832
        %v834 = vpop.f32.mrb[0].mxu0
        %v835 = vadd.f32 %v704, %v834
        %v836 = vpop.f32.mrb[0].mxu0
        %837 = vdwg.mxu0
        %838 = vmatprep.subr.mxu0 0.0
        %v839 = vand.u32 %v285, 4294901760
        %v840 = vsub.f32 %v285, %v839
        %v841 = vand.u32 %v840, 4294901760
        %842 = vmatpush1.msra.mxu0 %v841
        %843 = vmatprep.subr.mxu0 0.0
        %v844 = vand.u32 %v286, 4294901760
        %v845 = vsub.f32 %v286, %v844
        %v846 = vand.u32 %v845, 4294901760
        %847 = vmatpush1.msra.mxu0 %v846
        %848 = vmatprep.subr.mxu0 0.0
        %849 = vmatpush1.msra.mxu0 0.0
        %850 = vmatprep.subr.mxu0 0.0
        %851 = vmatpush1.msra.mxu0 0.0
        %852 = vmatprep.subr.mxu0 0.0
        %853 = vmatpush1.msra.mxu0 0.0
        %854 = vmatprep.subr.mxu0 0.0
        %855 = vmatpush1.msra.mxu0 0.0
        %856 = vmatprep.subr.mxu0 0.0
        %857 = vmatpush1.msra.mxu0 0.0
        %858 = vmatprep.subr.mxu0 0.0
        %859 = vmatpush1.msra.mxu0 0.0
        %860 = vmatprep.subr.mxu0 0.0
        %861 = vmatpush1.msra.mxu0 0.0
        %862 = vmatprep.subr.mxu0 0.0
        %863 = vmatpush1.msra.mxu0 0.0
        %864 = vmatprep.subr.mxu0 0.0
        %865 = vmatpush1.msra.mxu0 0.0
        %866 = vmatprep.subr.mxu0 0.0
        %867 = vmatpush1.msra.mxu0 0.0
        %868 = vmatprep.subr.mxu0 0.0
        %869 = vmatpush1.msra.mxu0 0.0
        %870 = vmatprep.subr.mxu0 0.0
        %871 = vmatpush1.msra.mxu0 0.0
        %872 = vmatprep.subr.mxu0 0.0
        %873 = vmatpush1.msra.mxu0 0.0
        %874 = vmatprep.subr.mxu0 0.0
        %875 = vmatpush1.msra.mxu0 0.0
        %876 = vmatprep.subr.mxu0 0.0
        %877 = vmatpush1.msra.mxu0 0.0
        %878 = vmatprep.subr.mxu0 0.0
        %879 = vmatpush1.msra.mxu0 0.0
        %880 = vmatprep.subr.mxu0 0.0
        %881 = vmatpush1.msra.mxu0 0.0
        %882 = vmatprep.subr.mxu0 0.0
        %883 = vmatpush1.msra.mxu0 0.0
        %884 = vmatprep.subr.mxu0 0.0
        %885 = vmatpush1.msra.mxu0 0.0
        %886 = vmatprep.subr.mxu0 0.0
        %887 = vmatpush1.msra.mxu0 0.0
        %888 = vmatprep.subr.mxu0 0.0
        %889 = vmatpush1.msra.mxu0 0.0
        %890 = vmatprep.subr.mxu0 0.0
        %891 = vmatpush1.msra.mxu0 0.0
        %892 = vmatprep.subr.mxu0 0.0
        %893 = vmatpush1.msra.mxu0 0.0
        %894 = vmatprep.subr.mxu0 0.0
        %895 = vmatpush1.msra.mxu0 0.0
        %896 = vmatprep.subr.mxu0 0.0
        %897 = vmatpush1.msra.mxu0 0.0
        %898 = vmatprep.subr.mxu0 0.0
        %899 = vmatpush1.msra.mxu0 0.0
        %900 = vmatprep.subr.mxu0 0.0
        %901 = vmatpush1.msra.mxu0 0.0
        %902 = vmatprep.subr.mxu0 0.0
        %903 = vmatpush1.msra.mxu0 0.0
        %904 = vmatprep.subr.mxu0 0.0
        %905 = vmatpush1.msra.mxu0 0.0
        %906 = vmatprep.subr.mxu0 0.0
        %907 = vmatpush1.msra.mxu0 0.0
        %908 = vmatprep.mubr.f32.mxu0 0.0
        %v909 = vand.u32 %v289, 4294901760
        %910 = vmatmul.mubr.f32.gmra.mrb[0].mxu0 %v909
        %v911 = vpop.f32.mrb[0].mxu0
        %v912 = vadd.f32 %v779, %v911
        %v913 = vpop.f32.mrb[0].mxu0
        %914 = vmatprep.mubr.f32.mxu0 0.0
        %v915 = vand.u32 %v292, 4294901760
        %916 = vmatmul.mubr.f32.gmra.mrb[0].mxu0 %v915
        %v917 = vpop.f32.mrb[0].mxu0
        %v918 = vadd.f32 %v787, %v917
        %v919 = vpop.f32.mrb[0].mxu0
        %920 = vmatprep.mubr.f32.mxu0 0.0
        %v921 = vand.u32 %v295, 4294901760
        %922 = vmatmul.mubr.f32.gmra.mrb[0].mxu0 %v921
        %v923 = vpop.f32.mrb[0].mxu0
        %v924 = vadd.f32 %v795, %v923
        %v925 = vpop.f32.mrb[0].mxu0
        %926 = vmatprep.mubr.f32.mxu0 0.0
        %v927 = vand.u32 %v298, 4294901760
        %928 = vmatmul.mubr.f32.gmra.mrb[0].mxu0 %v927
        %v929 = vpop.f32.mrb[0].mxu0
        %v930 = vadd.f32 %v803, %v929
        %v931 = vpop.f32.mrb[0].mxu0
        %932 = vmatprep.mubr.f32.mxu0 0.0
        %v933 = vand.u32 %v301, 4294901760
        %934 = vmatmul.mubr.f32.gmra.mrb[0].mxu0 %v933
        %v935 = vpop.f32.mrb[0].mxu0
        %v936 = vadd.f32 %v811, %v935
        %v937 = vpop.f32.mrb[0].mxu0
        %938 = vmatprep.mubr.f32.mxu0 0.0
        %v939 = vand.u32 %v304, 4294901760
        %940 = vmatmul.mubr.f32.gmra.mrb[0].mxu0 %v939
        %v941 = vpop.f32.mrb[0].mxu0
        %v942 = vadd.f32 %v819, %v941
        %v943 = vpop.f32.mrb[0].mxu0
        %944 = vmatprep.mubr.f32.mxu0 0.0
        %v945 = vand.u32 %v307, 4294901760
        %946 = vmatmul.mubr.f32.gmra.mrb[0].mxu0 %v945
        %v947 = vpop.f32.mrb[0].mxu0
        %v948 = vadd.f32 %v827, %v947
        %v949 = vpop.f32.mrb[0].mxu0
        %950 = vmatprep.mubr.f32.mxu0 0.0
        %v951 = vand.u32 %v310, 4294901760
        %952 = vmatmul.mubr.f32.gmra.mrb[0].mxu0 %v951
        %v953 = vpop.f32.mrb[0].mxu0
        %v954 = vadd.f32 %v835, %v953
        %v955 = vpop.f32.mrb[0].mxu0
        %956 = vdwg.mxu0
        %957 = vmatprep.subr.mxu0 0.0
        %v958 = vand.u32 %v285, 4294901760
        %959 = vmatpush1.msra.mxu0 %v958
        %960 = vmatprep.subr.mxu0 0.0
        %v961 = vand.u32 %v286, 4294901760
        %962 = vmatpush1.msra.mxu0 %v961
        %963 = vmatprep.subr.mxu0 0.0
        %964 = vmatpush1.msra.mxu0 0.0
        %965 = vmatprep.subr.mxu0 0.0
        %966 = vmatpush1.msra.mxu0 0.0
        %967 = vmatprep.subr.mxu0 0.0
        %968 = vmatpush1.msra.mxu0 0.0
        %969 = vmatprep.subr.mxu0 0.0
        %970 = vmatpush1.msra.mxu0 0.0
        %971 = vmatprep.subr.mxu0 0.0
        %972 = vmatpush1.msra.mxu0 0.0
        %973 = vmatprep.subr.mxu0 0.0
        %974 = vmatpush1.msra.mxu0 0.0
        %975 = vmatprep.subr.mxu0 0.0
        %976 = vmatpush1.msra.mxu0 0.0
        %977 = vmatprep.subr.mxu0 0.0
        %978 = vmatpush1.msra.mxu0 0.0
        %979 = vmatprep.subr.mxu0 0.0
        %980 = vmatpush1.msra.mxu0 0.0
        %981 = vmatprep.subr.mxu0 0.0
        %982 = vmatpush1.msra.mxu0 0.0
        %983 = vmatprep.subr.mxu0 0.0
        %984 = vmatpush1.msra.mxu0 0.0
        %985 = vmatprep.subr.mxu0 0.0
        %986 = vmatpush1.msra.mxu0 0.0
        %987 = vmatprep.subr.mxu0 0.0
        %988 = vmatpush1.msra.mxu0 0.0
        %989 = vmatprep.subr.mxu0 0.0
        %990 = vmatpush1.msra.mxu0 0.0
        %991 = vmatprep.subr.mxu0 0.0
        %992 = vmatpush1.msra.mxu0 0.0
        %993 = vmatprep.subr.mxu0 0.0
        %994 = vmatpush1.msra.mxu0 0.0
        %995 = vmatprep.subr.mxu0 0.0
        %996 = vmatpush1.msra.mxu0 0.0
        %997 = vmatprep.subr.mxu0 0.0
        %998 = vmatpush1.msra.mxu0 0.0
        %999 = vmatprep.subr.mxu0 0.0
        %1000 = vmatpush1.msra.mxu0 0.0
        %1001 = vmatprep.subr.mxu0 0.0
        %1002 = vmatpush1.msra.mxu0 0.0
        %1003 = vmatprep.subr.mxu0 0.0
        %1004 = vmatpush1.msra.mxu0 0.0
        %1005 = vmatprep.subr.mxu0 0.0
        %1006 = vmatpush1.msra.mxu0 0.0
        %1007 = vmatprep.subr.mxu0 0.0
        %1008 = vmatpush1.msra.mxu0 0.0
        %1009 = vmatprep.subr.mxu0 0.0
        %1010 = vmatpush1.msra.mxu0 0.0
        %1011 = vmatprep.subr.mxu0 0.0
        %1012 = vmatpush1.msra.mxu0 0.0
        %1013 = vmatprep.subr.mxu0 0.0
        %1014 = vmatpush1.msra.mxu0 0.0
        %1015 = vmatprep.subr.mxu0 0.0
        %1016 = vmatpush1.msra.mxu0 0.0
        %1017 = vmatprep.subr.mxu0 0.0
        %1018 = vmatpush1.msra.mxu0 0.0
        %1019 = vmatprep.subr.mxu0 0.0
        %1020 = vmatpush1.msra.mxu0 0.0
        %1021 = vmatprep.subr.mxu0 0.0
        %1022 = vmatpush1.msra.mxu0 0.0
        %1023 = vmatprep.mubr.f32.mxu0 0.0
        %v1024 = vand.u32 %v289, 4294901760
        %1025 = vmatmul.mubr.f32.gmra.mrb[0].mxu0 %v1024
        %v1026 = vpop.f32.mrb[0].mxu0
        %v1027 = vadd.f32 %v912, %v1026
        %v1028 = vpop.f32.mrb[0].mxu0
        %1029 = vmatprep.mubr.f32.mxu0 0.0
        %v1030 = vand.u32 %v292, 4294901760
        %1031 = vmatmul.mubr.f32.gmra.mrb[0].mxu0 %v1030
        %v1032 = vpop.f32.mrb[0].mxu0
        %v1033 = vadd.f32 %v918, %v1032
        %v1034 = vpop.f32.mrb[0].mxu0
        %1035 = vmatprep.mubr.f32.mxu0 0.0
        %v1036 = vand.u32 %v295, 4294901760
        %1037 = vmatmul.mubr.f32.gmra.mrb[0].mxu0 %v1036
        %v1038 = vpop.f32.mrb[0].mxu0
        %v1039 = vadd.f32 %v924, %v1038
        %v1040 = vpop.f32.mrb[0].mxu0
        %1041 = vmatprep.mubr.f32.mxu0 0.0
        %v1042 = vand.u32 %v298, 4294901760
        %1043 = vmatmul.mubr.f32.gmra.mrb[0].mxu0 %v1042
        %v1044 = vpop.f32.mrb[0].mxu0
        %v1045 = vadd.f32 %v930, %v1044
        %v1046 = vpop.f32.mrb[0].mxu0
        %1047 = vmatprep.mubr.f32.mxu0 0.0
        %v1048 = vand.u32 %v301, 4294901760
        %1049 = vmatmul.mubr.f32.gmra.mrb[0].mxu0 %v1048
        %v1050 = vpop.f32.mrb[0].mxu0
        %v1051 = vadd.f32 %v936, %v1050
        %v1052 = vpop.f32.mrb[0].mxu0
        %1053 = vmatprep.mubr.f32.mxu0 0.0
        %v1054 = vand.u32 %v304, 4294901760
        %1055 = vmatmul.mubr.f32.gmra.mrb[0].mxu0 %v1054
        %v1056 = vpop.f32.mrb[0].mxu0
        %v1057 = vadd.f32 %v942, %v1056
        %v1058 = vpop.f32.mrb[0].mxu0
        %1059 = vmatprep.mubr.f32.mxu0 0.0
        %v1060 = vand.u32 %v307, 4294901760
        %1061 = vmatmul.mubr.f32.gmra.mrb[0].mxu0 %v1060
        %v1062 = vpop.f32.mrb[0].mxu0
        %v1063 = vadd.f32 %v948, %v1062
        %v1064 = vpop.f32.mrb[0].mxu0
        %1065 = vmatprep.mubr.f32.mxu0 0.0
        %v1066 = vand.u32 %v310, 4294901760
        %1067 = vmatmul.mubr.f32.gmra.mrb[0].mxu0 %v1066
        %v1068 = vpop.f32.mrb[0].mxu0
        %v1069 = vadd.f32 %v954, %v1068
        %v1070 = vpop.f32.mrb[0].mxu0
        %1071 = vdwg.mxu0
        %v1076 = vrot.slane %v1027, 6
        %v1077 = vrot.slane %v1039, 6
        %v1078 = vrot.slane %v1051, 6
        %v1079 = vrot.slane %v1063, 6
        %v1084 = vrot.slane %v1027, 4
        %v1085 = vrot.slane %v1039, 4
        %v1086 = vrot.slane %v1051, 4
        %v1087 = vrot.slane %v1063, 4
        %v1092 = vrot.slane %v1027, 2
        %v1093 = vrot.slane %v1039, 2
        %v1094 = vrot.slane %v1051, 2
        %v1095 = vrot.slane %v1063, 2
        %vm1104 = vcmask 1045504
        %v1105 = vrot.slane %v1033, 2
        %v1106 = vsel %vm1104, %v1092, %v1105
        %v1107 = vrot.slane %v1045, 2
        %v1108 = vsel %vm1104, %v1093, %v1107
        %v1109 = vrot.slane %v1057, 2
        %v1110 = vsel %vm1104, %v1094, %v1109
        %v1111 = vrot.slane %v1069, 2
        %v1112 = vsel %vm1104, %v1095, %v1111
        %v1121 = vrot.slane %v1033, 6
        %v1122 = vrot.slane %v1045, 6
        %v1123 = vrot.slane %v1057, 6
        %v1124 = vrot.slane %v1069, 6
        %v1129 = vrot.slane %v1033, 4
        %v1130 = vrot.slane %v1045, 4
        %v1131 = vrot.slane %v1057, 4
        %v1132 = vrot.slane %v1069, 4
        %vm1137 = vcmask 1040384
        %v1138 = vsel %vm1137, %v1076, %v1084
        %v1139 = vsel %vm1137, %v1077, %v1085
        %v1140 = vsel %vm1137, %v1078, %v1086
        %v1141 = vsel %vm1137, %v1079, %v1087
        %vm1142 = vcmask 1041408
        %v1143 = vsel %vm1142, %v1138, %v1092
        %v1144 = vsel %vm1142, %v1139, %v1093
        %v1145 = vsel %vm1142, %v1140, %v1094
        %v1146 = vsel %vm1142, %v1141, %v1095
        %vm1147 = vcmask 1042432
        %v1148 = vsel %vm1147, %v1143, %v1027
        %v1149 = vsel %vm1147, %v1144, %v1039
        %v1150 = vsel %vm1147, %v1145, %v1051
        %v1151 = vsel %vm1147, %v1146, %v1063
        %vm1152 = vcmask 1043456
        %v1153 = vsel %vm1152, %v1148, %v1076
        %v1154 = vsel %vm1152, %v1149, %v1077
        %v1155 = vsel %vm1152, %v1150, %v1078
        %v1156 = vsel %vm1152, %v1151, %v1079
        %vm1157 = vcmask 1044480
        %v1158 = vsel %vm1157, %v1153, %v1084
        %v1159 = vsel %vm1157, %v1154, %v1085
        %v1160 = vsel %vm1157, %v1155, %v1086
        %v1161 = vsel %vm1157, %v1156, %v1087
        %v1162 = vsel %vm1104, %v1158, %v1092
        %v1163 = vsel %vm1104, %v1159, %v1093
        %v1164 = vsel %vm1104, %v1160, %v1094
        %v1165 = vsel %vm1104, %v1161, %v1095
        %v1166 = vsel %vm1104, %v1105, %v1033
        %v1167 = vsel %vm1104, %v1107, %v1045
        %v1168 = vsel %vm1104, %v1109, %v1057
        %v1169 = vsel %vm1104, %v1111, %v1069
        %vm1170 = vcmask 1046528
        %v1171 = vsel %vm1170, %v1166, %v1121
        %v1172 = vsel %vm1170, %v1167, %v1122
        %v1173 = vsel %vm1170, %v1168, %v1123
        %v1174 = vsel %vm1170, %v1169, %v1124
        %v1175 = vsel %vm1137, %v1129, %v1105
        %v1176 = vsel %vm1137, %v1130, %v1107
        %v1177 = vsel %vm1137, %v1131, %v1109
        %v1178 = vsel %vm1137, %v1132, %v1111
        %v1179 = vsel %vm1142, %v1175, %v1033
        %v1180 = vsel %vm1142, %v1176, %v1045
        %v1181 = vsel %vm1142, %v1177, %v1057
        %v1182 = vsel %vm1142, %v1178, %v1069
        %v1183 = vsel %vm1147, %v1179, %v1121
        %v1184 = vsel %vm1147, %v1180, %v1122
        %v1185 = vsel %vm1147, %v1181, %v1123
        %v1186 = vsel %vm1147, %v1182, %v1124
        %v1187 = vmul.f32 %v1162, 0.036107913
        %v1188 = vmul.f32 %v1106, 0.036107913
        %v1189 = vmul.f32 %v1163, 0.036107913
        %v1190 = vmul.f32 %v1108, 0.036107913
        %v1191 = vmul.f32 %v1164, 0.036107913
        %v1192 = vmul.f32 %v1110, 0.036107913
        %v1193 = vmul.f32 %v1165, 0.036107913
        %v1194 = vmul.f32 %v1112, 0.036107913
        %v1195 = vmul.f32 %v1162, 0.05092032
        %v1196 = vmul.f32 %v1106, 0.05092032
        %v1197 = vmul.f32 %v1171, 0.05092032
        %v1198 = vmul.f32 %v1163, 0.05092032
        %v1199 = vmul.f32 %v1108, 0.05092032
        %v1200 = vmul.f32 %v1172, 0.05092032
        %v1201 = vmul.f32 %v1164, 0.05092032
        %v1202 = vmul.f32 %v1110, 0.05092032
        %v1203 = vmul.f32 %v1173, 0.05092032
        %v1204 = vmul.f32 %v1165, 0.05092032
        %v1205 = vmul.f32 %v1112, 0.05092032
        %v1206 = vmul.f32 %v1174, 0.05092032
        %v1219 = vrot.slane %v1195, 1
        %v1220 = vrot.slane %v1196, 1
        %v1221 = vsel %vm1170, %v1219, %v1220
        %v1222 = vrot.slane %v1197, 1
        %v1223 = vsel %vm1170, %v1220, %v1222
        %v1224 = vrot.slane %v1198, 1
        %v1225 = vrot.slane %v1199, 1
        %v1226 = vsel %vm1170, %v1224, %v1225
        %v1227 = vrot.slane %v1200, 1
        %v1228 = vsel %vm1170, %v1225, %v1227
        %v1229 = vrot.slane %v1201, 1
        %v1230 = vrot.slane %v1202, 1
        %v1231 = vsel %vm1170, %v1229, %v1230
        %v1232 = vrot.slane %v1203, 1
        %v1233 = vsel %vm1170, %v1230, %v1232
        %v1234 = vrot.slane %v1204, 1
        %v1235 = vrot.slane %v1205, 1
        %v1236 = vsel %vm1170, %v1234, %v1235
        %v1237 = vrot.slane %v1206, 1
        %v1238 = vsel %vm1170, %v1235, %v1237
        %v1247 = vadd.f32 %v1187, %v1221
        %v1248 = vadd.f32 %v1188, %v1223
        %v1249 = vadd.f32 %v1189, %v1226
        %v1250 = vadd.f32 %v1190, %v1228
        %v1251 = vadd.f32 %v1191, %v1231
        %v1252 = vadd.f32 %v1192, %v1233
        %v1253 = vadd.f32 %v1193, %v1236
        %v1254 = vadd.f32 %v1194, %v1238
        %v1255 = vmul.f32 %v1162, 0.06745846
        %v1256 = vmul.f32 %v1106, 0.06745846
        %v1257 = vmul.f32 %v1171, 0.06745846
        %v1258 = vmul.f32 %v1163, 0.06745846
        %v1259 = vmul.f32 %v1108, 0.06745846
        %v1260 = vmul.f32 %v1172, 0.06745846
        %v1261 = vmul.f32 %v1164, 0.06745846
        %v1262 = vmul.f32 %v1110, 0.06745846
        %v1263 = vmul.f32 %v1173, 0.06745846
        %v1264 = vmul.f32 %v1165, 0.06745846
        %v1265 = vmul.f32 %v1112, 0.06745846
        %v1266 = vmul.f32 %v1174, 0.06745846
        %v1279 = vrot.slane %v1255, 2
        %v1280 = vrot.slane %v1256, 2
        %v1281 = vsel %vm1104, %v1279, %v1280
        %v1282 = vrot.slane %v1257, 2
        %v1283 = vsel %vm1104, %v1280, %v1282
        %v1284 = vrot.slane %v1258, 2
        %v1285 = vrot.slane %v1259, 2
        %v1286 = vsel %vm1104, %v1284, %v1285
        %v1287 = vrot.slane %v1260, 2
        %v1288 = vsel %vm1104, %v1285, %v1287
        %v1289 = vrot.slane %v1261, 2
        %v1290 = vrot.slane %v1262, 2
        %v1291 = vsel %vm1104, %v1289, %v1290
        %v1292 = vrot.slane %v1263, 2
        %v1293 = vsel %vm1104, %v1290, %v1292
        %v1294 = vrot.slane %v1264, 2
        %v1295 = vrot.slane %v1265, 2
        %v1296 = vsel %vm1104, %v1294, %v1295
        %v1297 = vrot.slane %v1266, 2
        %v1298 = vsel %vm1104, %v1295, %v1297
        %v1307 = vadd.f32 %v1247, %v1281
        %v1308 = vadd.f32 %v1248, %v1283
        %v1309 = vadd.f32 %v1249, %v1286
        %v1310 = vadd.f32 %v1250, %v1288
        %v1311 = vadd.f32 %v1251, %v1291
        %v1312 = vadd.f32 %v1252, %v1293
        %v1313 = vadd.f32 %v1253, %v1296
        %v1314 = vadd.f32 %v1254, %v1298
        %v1315 = vmul.f32 %v1162, 0.08395341
        %v1316 = vmul.f32 %v1106, 0.08395341
        %v1317 = vmul.f32 %v1171, 0.08395341
        %v1318 = vmul.f32 %v1163, 0.08395341
        %v1319 = vmul.f32 %v1108, 0.08395341
        %v1320 = vmul.f32 %v1172, 0.08395341
        %v1321 = vmul.f32 %v1164, 0.08395341
        %v1322 = vmul.f32 %v1110, 0.08395341
        %v1323 = vmul.f32 %v1173, 0.08395341
        %v1324 = vmul.f32 %v1165, 0.08395341
        %v1325 = vmul.f32 %v1112, 0.08395341
        %v1326 = vmul.f32 %v1174, 0.08395341
        %v1339 = vrot.slane %v1315, 3
        %v1340 = vrot.slane %v1316, 3
        %v1341 = vsel %vm1157, %v1339, %v1340
        %v1342 = vrot.slane %v1317, 3
        %v1343 = vsel %vm1157, %v1340, %v1342
        %v1344 = vrot.slane %v1318, 3
        %v1345 = vrot.slane %v1319, 3
        %v1346 = vsel %vm1157, %v1344, %v1345
        %v1347 = vrot.slane %v1320, 3
        %v1348 = vsel %vm1157, %v1345, %v1347
        %v1349 = vrot.slane %v1321, 3
        %v1350 = vrot.slane %v1322, 3
        %v1351 = vsel %vm1157, %v1349, %v1350
        %v1352 = vrot.slane %v1323, 3
        %v1353 = vsel %vm1157, %v1350, %v1352
        %v1354 = vrot.slane %v1324, 3
        %v1355 = vrot.slane %v1325, 3
        %v1356 = vsel %vm1157, %v1354, %v1355
        %v1357 = vrot.slane %v1326, 3
        %v1358 = vsel %vm1157, %v1355, %v1357
        %v1367 = vadd.f32 %v1307, %v1341
        %v1368 = vadd.f32 %v1308, %v1343
        %v1369 = vadd.f32 %v1309, %v1346
        %v1370 = vadd.f32 %v1310, %v1348
        %v1371 = vadd.f32 %v1311, %v1351
        %v1372 = vadd.f32 %v1312, %v1353
        %v1373 = vadd.f32 %v1313, %v1356
        %v1374 = vadd.f32 %v1314, %v1358
        %v1375 = vmul.f32 %v1162, 0.09815148
        %v1376 = vmul.f32 %v1106, 0.09815148
        %v1377 = vmul.f32 %v1171, 0.09815148
        %v1378 = vmul.f32 %v1163, 0.09815148
        %v1379 = vmul.f32 %v1108, 0.09815148
        %v1380 = vmul.f32 %v1172, 0.09815148
        %v1381 = vmul.f32 %v1164, 0.09815148
        %v1382 = vmul.f32 %v1110, 0.09815148
        %v1383 = vmul.f32 %v1173, 0.09815148
        %v1384 = vmul.f32 %v1165, 0.09815148
        %v1385 = vmul.f32 %v1112, 0.09815148
        %v1386 = vmul.f32 %v1174, 0.09815148
        %v1399 = vrot.slane %v1375, 4
        %v1400 = vrot.slane %v1376, 4
        %v1401 = vsel %vm1152, %v1399, %v1400
        %v1402 = vrot.slane %v1377, 4
        %v1403 = vsel %vm1152, %v1400, %v1402
        %v1404 = vrot.slane %v1378, 4
        %v1405 = vrot.slane %v1379, 4
        %v1406 = vsel %vm1152, %v1404, %v1405
        %v1407 = vrot.slane %v1380, 4
        %v1408 = vsel %vm1152, %v1405, %v1407
        %v1409 = vrot.slane %v1381, 4
        %v1410 = vrot.slane %v1382, 4
        %v1411 = vsel %vm1152, %v1409, %v1410
        %v1412 = vrot.slane %v1383, 4
        %v1413 = vsel %vm1152, %v1410, %v1412
        %v1414 = vrot.slane %v1384, 4
        %v1415 = vrot.slane %v1385, 4
        %v1416 = vsel %vm1152, %v1414, %v1415
        %v1417 = vrot.slane %v1386, 4
        %v1418 = vsel %vm1152, %v1415, %v1417
        %v1427 = vadd.f32 %v1367, %v1401
        %v1428 = vadd.f32 %v1368, %v1403
        %v1429 = vadd.f32 %v1369, %v1406
        %v1430 = vadd.f32 %v1370, %v1408
        %v1431 = vadd.f32 %v1371, %v1411
        %v1432 = vadd.f32 %v1372, %v1413
        %v1433 = vadd.f32 %v1373, %v1416
        %v1434 = vadd.f32 %v1374, %v1418
        %v1435 = vmul.f32 %v1162, 0.107798316
        %v1436 = vmul.f32 %v1106, 0.107798316
        %v1437 = vmul.f32 %v1171, 0.107798316
        %v1438 = vmul.f32 %v1163, 0.107798316
        %v1439 = vmul.f32 %v1108, 0.107798316
        %v1440 = vmul.f32 %v1172, 0.107798316
        %v1441 = vmul.f32 %v1164, 0.107798316
        %v1442 = vmul.f32 %v1110, 0.107798316
        %v1443 = vmul.f32 %v1173, 0.107798316
        %v1444 = vmul.f32 %v1165, 0.107798316
        %v1445 = vmul.f32 %v1112, 0.107798316
        %v1446 = vmul.f32 %v1174, 0.107798316
        %v1459 = vrot.slane %v1435, 5
        %v1460 = vrot.slane %v1436, 5
        %v1461 = vsel %vm1147, %v1459, %v1460
        %v1462 = vrot.slane %v1437, 5
        %v1463 = vsel %vm1147, %v1460, %v1462
        %v1464 = vrot.slane %v1438, 5
        %v1465 = vrot.slane %v1439, 5
        %v1466 = vsel %vm1147, %v1464, %v1465
        %v1467 = vrot.slane %v1440, 5
        %v1468 = vsel %vm1147, %v1465, %v1467
        %v1469 = vrot.slane %v1441, 5
        %v1470 = vrot.slane %v1442, 5
        %v1471 = vsel %vm1147, %v1469, %v1470
        %v1472 = vrot.slane %v1443, 5
        %v1473 = vsel %vm1147, %v1470, %v1472
        %v1474 = vrot.slane %v1444, 5
        %v1475 = vrot.slane %v1445, 5
        %v1476 = vsel %vm1147, %v1474, %v1475
        %v1477 = vrot.slane %v1446, 5
        %v1478 = vsel %vm1147, %v1475, %v1477
        %v1487 = vadd.f32 %v1427, %v1461
        %v1488 = vadd.f32 %v1428, %v1463
        %v1489 = vadd.f32 %v1429, %v1466
        %v1490 = vadd.f32 %v1430, %v1468
        %v1491 = vadd.f32 %v1431, %v1471
        %v1492 = vadd.f32 %v1432, %v1473
        %v1493 = vadd.f32 %v1433, %v1476
        %v1494 = vadd.f32 %v1434, %v1478
        %v1495 = vmul.f32 %v1162, 0.1112202
        %v1496 = vmul.f32 %v1106, 0.1112202
        %v1497 = vmul.f32 %v1171, 0.1112202
        %v1498 = vmul.f32 %v1163, 0.1112202
        %v1499 = vmul.f32 %v1108, 0.1112202
        %v1500 = vmul.f32 %v1172, 0.1112202
        %v1501 = vmul.f32 %v1164, 0.1112202
        %v1502 = vmul.f32 %v1110, 0.1112202
        %v1503 = vmul.f32 %v1173, 0.1112202
        %v1504 = vmul.f32 %v1165, 0.1112202
        %v1505 = vmul.f32 %v1112, 0.1112202
        %v1506 = vmul.f32 %v1174, 0.1112202
        %v1519 = vrot.slane %v1495, 6
        %v1520 = vrot.slane %v1496, 6
        %v1521 = vsel %vm1142, %v1519, %v1520
        %v1522 = vrot.slane %v1497, 6
        %v1523 = vsel %vm1142, %v1520, %v1522
        %v1524 = vrot.slane %v1498, 6
        %v1525 = vrot.slane %v1499, 6
        %v1526 = vsel %vm1142, %v1524, %v1525
        %v1527 = vrot.slane %v1500, 6
        %v1528 = vsel %vm1142, %v1525, %v1527
        %v1529 = vrot.slane %v1501, 6
        %v1530 = vrot.slane %v1502, 6
        %v1531 = vsel %vm1142, %v1529, %v1530
        %v1532 = vrot.slane %v1503, 6
        %v1533 = vsel %vm1142, %v1530, %v1532
        %v1534 = vrot.slane %v1504, 6
        %v1535 = vrot.slane %v1505, 6
        %v1536 = vsel %vm1142, %v1534, %v1535
        %v1537 = vrot.slane %v1506, 6
        %v1538 = vsel %vm1142, %v1535, %v1537
        %v1547 = vadd.f32 %v1487, %v1521
        %v1548 = vadd.f32 %v1488, %v1523
        %v1549 = vadd.f32 %v1489, %v1526
        %v1550 = vadd.f32 %v1490, %v1528
        %v1551 = vadd.f32 %v1491, %v1531
        %v1552 = vadd.f32 %v1492, %v1533
        %v1553 = vadd.f32 %v1493, %v1536
        %v1554 = vadd.f32 %v1494, %v1538
        %v1555 = vrot.slane %v1435, 7
        %v1556 = vrot.slane %v1436, 7
        %v1557 = vsel %vm1137, %v1555, %v1556
        %v1558 = vrot.slane %v1437, 7
        %v1559 = vsel %vm1137, %v1556, %v1558
        %v1560 = vrot.slane %v1438, 7
        %v1561 = vrot.slane %v1439, 7
        %v1562 = vsel %vm1137, %v1560, %v1561
        %v1563 = vrot.slane %v1440, 7
        %v1564 = vsel %vm1137, %v1561, %v1563
        %v1565 = vrot.slane %v1441, 7
        %v1566 = vrot.slane %v1442, 7
        %v1567 = vsel %vm1137, %v1565, %v1566
        %v1568 = vrot.slane %v1443, 7
        %v1569 = vsel %vm1137, %v1566, %v1568
        %v1570 = vrot.slane %v1444, 7
        %v1571 = vrot.slane %v1445, 7
        %v1572 = vsel %vm1137, %v1570, %v1571
        %v1573 = vrot.slane %v1446, 7
        %v1574 = vsel %vm1137, %v1571, %v1573
        %v1583 = vadd.f32 %v1547, %v1557
        %v1584 = vadd.f32 %v1548, %v1559
        %v1585 = vadd.f32 %v1549, %v1562
        %v1586 = vadd.f32 %v1550, %v1564
        %v1587 = vadd.f32 %v1551, %v1567
        %v1588 = vadd.f32 %v1552, %v1569
        %v1589 = vadd.f32 %v1553, %v1572
        %v1590 = vadd.f32 %v1554, %v1574
        %v1591 = vadd.f32 %v1583, %v1376
        %v1592 = vadd.f32 %v1584, %v1377
        %v1593 = vadd.f32 %v1585, %v1379
        %v1594 = vadd.f32 %v1586, %v1380
        %v1595 = vadd.f32 %v1587, %v1382
        %v1596 = vadd.f32 %v1588, %v1383
        %v1597 = vadd.f32 %v1589, %v1385
        %v1598 = vadd.f32 %v1590, %v1386
        %v1599 = vmul.f32 %v1183, 0.08395341
        %v1600 = vmul.f32 %v1184, 0.08395341
        %v1601 = vmul.f32 %v1185, 0.08395341
        %v1602 = vmul.f32 %v1186, 0.08395341
        %v1607 = vrot.slane %v1316, 1
        %v1608 = vrot.slane %v1317, 1
        %v1609 = vsel %vm1170, %v1607, %v1608
        %v1610 = vrot.slane %v1599, 1
        %v1611 = vsel %vm1170, %v1608, %v1610
        %v1612 = vrot.slane %v1319, 1
        %v1613 = vrot.slane %v1320, 1
        %v1614 = vsel %vm1170, %v1612, %v1613
        %v1615 = vrot.slane %v1600, 1
        %v1616 = vsel %vm1170, %v1613, %v1615
        %v1617 = vrot.slane %v1322, 1
        %v1618 = vrot.slane %v1323, 1
        %v1619 = vsel %vm1170, %v1617, %v1618
        %v1620 = vrot.slane %v1601, 1
        %v1621 = vsel %vm1170, %v1618, %v1620
        %v1622 = vrot.slane %v1325, 1
        %v1623 = vrot.slane %v1326, 1
        %v1624 = vsel %vm1170, %v1622, %v1623
        %v1625 = vrot.slane %v1602, 1
        %v1626 = vsel %vm1170, %v1623, %v1625
        %v1635 = vadd.f32 %v1591, %v1609
        %v1636 = vadd.f32 %v1592, %v1611
        %v1637 = vadd.f32 %v1593, %v1614
        %v1638 = vadd.f32 %v1594, %v1616
        %v1639 = vadd.f32 %v1595, %v1619
        %v1640 = vadd.f32 %v1596, %v1621
        %v1641 = vadd.f32 %v1597, %v1624
        %v1642 = vadd.f32 %v1598, %v1626
        %v1643 = vmul.f32 %v1183, 0.06745846
        %v1644 = vmul.f32 %v1184, 0.06745846
        %v1645 = vmul.f32 %v1185, 0.06745846
        %v1646 = vmul.f32 %v1186, 0.06745846
        %v1651 = vrot.slane %v1643, 2
        %v1652 = vsel %vm1104, %v1282, %v1651
        %v1653 = vrot.slane %v1644, 2
        %v1654 = vsel %vm1104, %v1287, %v1653
        %v1655 = vrot.slane %v1645, 2
        %v1656 = vsel %vm1104, %v1292, %v1655
        %v1657 = vrot.slane %v1646, 2
        %v1658 = vsel %vm1104, %v1297, %v1657
        %v1663 = vadd.f32 %v1635, %v1283
        %v1664 = vadd.f32 %v1636, %v1652
        %v1665 = vadd.f32 %v1637, %v1288
        %v1666 = vadd.f32 %v1638, %v1654
        %v1667 = vadd.f32 %v1639, %v1293
        %v1668 = vadd.f32 %v1640, %v1656
        %v1669 = vadd.f32 %v1641, %v1298
        %v1670 = vadd.f32 %v1642, %v1658
        %v1671 = vmul.f32 %v1183, 0.05092032
        %v1672 = vmul.f32 %v1184, 0.05092032
        %v1673 = vmul.f32 %v1185, 0.05092032
        %v1674 = vmul.f32 %v1186, 0.05092032
        %v1679 = vrot.slane %v1196, 3
        %v1680 = vrot.slane %v1197, 3
        %v1681 = vsel %vm1157, %v1679, %v1680
        %v1682 = vrot.slane %v1671, 3
        %v1683 = vsel %vm1157, %v1680, %v1682
        %v1684 = vrot.slane %v1199, 3
        %v1685 = vrot.slane %v1200, 3
        %v1686 = vsel %vm1157, %v1684, %v1685
        %v1687 = vrot.slane %v1672, 3
        %v1688 = vsel %vm1157, %v1685, %v1687
        %v1689 = vrot.slane %v1202, 3
        %v1690 = vrot.slane %v1203, 3
        %v1691 = vsel %vm1157, %v1689, %v1690
        %v1692 = vrot.slane %v1673, 3
        %v1693 = vsel %vm1157, %v1690, %v1692
        %v1694 = vrot.slane %v1205, 3
        %v1695 = vrot.slane %v1206, 3
        %v1696 = vsel %vm1157, %v1694, %v1695
        %v1697 = vrot.slane %v1674, 3
        %v1698 = vsel %vm1157, %v1695, %v1697
        %v1707 = vadd.f32 %v1663, %v1681
        %v1708 = vadd.f32 %v1664, %v1683
        %v1709 = vadd.f32 %v1665, %v1686
        %v1710 = vadd.f32 %v1666, %v1688
        %v1711 = vadd.f32 %v1667, %v1691
        %v1712 = vadd.f32 %v1668, %v1693
        %v1713 = vadd.f32 %v1669, %v1696
        %v1714 = vadd.f32 %v1670, %v1698
        %v1715 = vmul.f32 %v1171, 0.036107913
        %v1716 = vmul.f32 %v1183, 0.036107913
        %v1717 = vmul.f32 %v1172, 0.036107913
        %v1718 = vmul.f32 %v1184, 0.036107913
        %v1719 = vmul.f32 %v1173, 0.036107913
        %v1720 = vmul.f32 %v1185, 0.036107913
        %v1721 = vmul.f32 %v1174, 0.036107913
        %v1722 = vmul.f32 %v1186, 0.036107913
        %v1735 = vrot.slane %v1188, 4
        %v1736 = vrot.slane %v1715, 4
        %v1737 = vsel %vm1152, %v1735, %v1736
        %v1738 = vrot.slane %v1716, 4
        %v1739 = vsel %vm1152, %v1736, %v1738
        %v1740 = vrot.slane %v1190, 4
        %v1741 = vrot.slane %v1717, 4
        %v1742 = vsel %vm1152, %v1740, %v1741
        %v1743 = vrot.slane %v1718, 4
        %v1744 = vsel %vm1152, %v1741, %v1743
        %v1745 = vrot.slane %v1192, 4
        %v1746 = vrot.slane %v1719, 4
        %v1747 = vsel %vm1152, %v1745, %v1746
        %v1748 = vrot.slane %v1720, 4
        %v1749 = vsel %vm1152, %v1746, %v1748
        %v1750 = vrot.slane %v1194, 4
        %v1751 = vrot.slane %v1721, 4
        %v1752 = vsel %vm1152, %v1750, %v1751
        %v1753 = vrot.slane %v1722, 4
        %v1754 = vsel %vm1152, %v1751, %v1753
        %v1763 = vadd.f32 %v1707, %v1737
        %v1764 = vadd.f32 %v1708, %v1739
        %v1765 = vadd.f32 %v1709, %v1742
        %v1766 = vadd.f32 %v1710, %v1744
        %v1767 = vadd.f32 %v1711, %v1747
        %v1768 = vadd.f32 %v1712, %v1749
        %v1769 = vadd.f32 %v1713, %v1752
        %v1770 = vadd.f32 %v1714, %v1754
        %v1771 = vsel %vm1104, %v1105, 0.0
        %v1772 = vsel %vm1104, %v1107, 0.0
        %v1773 = vsel %vm1104, %v1109, 0.0
        %v1774 = vsel %vm1104, %v1111, 0.0
        %v1775 = vsel %vm1142, %v1076, %v1121
        %v1776 = vsel %vm1142, %v1077, %v1122
        %v1777 = vsel %vm1142, %v1078, %v1123
        %v1778 = vsel %vm1142, %v1079, %v1124
        %1779 = vrot.lane.b32.xlu0 %v1076, 112
        %v1780 = vpop.permute.xlu0 %1779
        %1781 = vrot.lane.b32.xlu0 %v1775, 112
        %v1782 = vpop.permute.xlu0 %1781
        %1783 = vrot.lane.b32.xlu0 %v1077, 112
        %v1784 = vpop.permute.xlu0 %1783
        %1785 = vrot.lane.b32.xlu0 %v1776, 112
        %v1786 = vpop.permute.xlu0 %1785
        %1787 = vrot.lane.b32.xlu0 %v1078, 112
        %v1788 = vpop.permute.xlu0 %1787
        %1789 = vrot.lane.b32.xlu0 %v1777, 112
        %v1790 = vpop.permute.xlu0 %1789
        %1791 = vrot.lane.b32.xlu0 %v1079, 112
        %v1792 = vpop.permute.xlu0 %1791
        %1793 = vrot.lane.b32.xlu0 %v1778, 112
        %v1794 = vpop.permute.xlu0 %1793
        %v1799 = vsel %vm1142, 0.0, %v1780
        %v1800 = vsel %vm1142, 0.0, %v1784
        %v1801 = vsel %vm1142, 0.0, %v1788
        %v1802 = vsel %vm1142, 0.0, %v1792
        %1807 = vrot.lane.b32.xlu0 %v1799, 16
        %v1808 = vpop.permute.xlu0 %1807
        %1809 = vrot.lane.b32.xlu0 %v1782, 16
        %v1810 = vpop.permute.xlu0 %1809
        %1811 = vrot.lane.b32.xlu0 %v1800, 16
        %v1812 = vpop.permute.xlu0 %1811
        %1813 = vrot.lane.b32.xlu0 %v1786, 16
        %v1814 = vpop.permute.xlu0 %1813
        %1815 = vrot.lane.b32.xlu0 %v1801, 16
        %v1816 = vpop.permute.xlu0 %1815
        %1817 = vrot.lane.b32.xlu0 %v1790, 16
        %v1818 = vpop.permute.xlu0 %1817
        %1819 = vrot.lane.b32.xlu0 %v1802, 16
        %v1820 = vpop.permute.xlu0 %1819
        %1821 = vrot.lane.b32.xlu0 %v1794, 16
        %v1822 = vpop.permute.xlu0 %1821
        %v1831 = vadd.f32 %v1106, %v1808
        %v1832 = vadd.f32 %v1771, %v1810
        %v1833 = vadd.f32 %v1108, %v1812
        %v1834 = vadd.f32 %v1772, %v1814
        %v1835 = vadd.f32 %v1110, %v1816
        %v1836 = vadd.f32 %v1773, %v1818
        %v1837 = vadd.f32 %v1112, %v1820
        %v1838 = vadd.f32 %v1774, %v1822
        %v1839 = vrot.slane %v1027, 1
        %v1840 = vrot.slane %v1033, 1
        %v1841 = vsel %vm1170, %v1839, %v1840
        %v1842 = vrot.slane %v1039, 1
        %v1843 = vrot.slane %v1045, 1
        %v1844 = vsel %vm1170, %v1842, %v1843
        %v1845 = vrot.slane %v1051, 1
        %v1846 = vrot.slane %v1057, 1
        %v1847 = vsel %vm1170, %v1845, %v1846
        %v1848 = vrot.slane %v1063, 1
        %v1849 = vrot.slane %v1069, 1
        %v1850 = vsel %vm1170, %v1848, %v1849
        %v1855 = vsel %vm1170, %v1840, 0.0
        %v1856 = vsel %vm1170, %v1843, 0.0
        %v1857 = vsel %vm1170, %v1846, 0.0
        %v1858 = vsel %vm1170, %v1849, 0.0
        %1863 = vrot.lane.b32.xlu0 %v1841, 112
        %v1864 = vpop.permute.xlu0 %1863
        %1865 = vrot.lane.b32.xlu0 %v1855, 112
        %v1866 = vpop.permute.xlu0 %1865
        %1867 = vrot.lane.b32.xlu0 %v1844, 112
        %v1868 = vpop.permute.xlu0 %1867
        %1869 = vrot.lane.b32.xlu0 %v1856, 112
        %v1870 = vpop.permute.xlu0 %1869
        %1871 = vrot.lane.b32.xlu0 %v1847, 112
        %v1872 = vpop.permute.xlu0 %1871
        %1873 = vrot.lane.b32.xlu0 %v1857, 112
        %v1874 = vpop.permute.xlu0 %1873
        %1875 = vrot.lane.b32.xlu0 %v1850, 112
        %v1876 = vpop.permute.xlu0 %1875
        %1877 = vrot.lane.b32.xlu0 %v1858, 112
        %v1878 = vpop.permute.xlu0 %1877
        %v1887 = vadd.f32 %v1831, %v1864
        %v1888 = vadd.f32 %v1832, %v1866
        %v1889 = vadd.f32 %v1833, %v1868
        %v1890 = vadd.f32 %v1834, %v1870
        %v1891 = vadd.f32 %v1835, %v1872
        %v1892 = vadd.f32 %v1836, %v1874
        %v1893 = vadd.f32 %v1837, %v1876
        %v1894 = vadd.f32 %v1838, %v1878
        %v1895 = vrot.slane %v1027, 7
        %v1896 = vrot.slane %v1033, 7
        %v1897 = vsel %vm1137, %v1895, %v1896
        %v1898 = vrot.slane %v1039, 7
        %v1899 = vrot.slane %v1045, 7
        %v1900 = vsel %vm1137, %v1898, %v1899
        %v1901 = vrot.slane %v1051, 7
        %v1902 = vrot.slane %v1057, 7
        %v1903 = vsel %vm1137, %v1901, %v1902
        %v1904 = vrot.slane %v1063, 7
        %v1905 = vrot.slane %v1069, 7
        %v1906 = vsel %vm1137, %v1904, %v1905
        %1907 = vrot.lane.b32.xlu0 %v1895, 96
        %v1908 = vpop.permute.xlu0 %1907
        %1909 = vrot.lane.b32.xlu0 %v1897, 96
        %v1910 = vpop.permute.xlu0 %1909
        %1911 = vrot.lane.b32.xlu0 %v1898, 96
        %v1912 = vpop.permute.xlu0 %1911
        %1913 = vrot.lane.b32.xlu0 %v1900, 96
        %v1914 = vpop.permute.xlu0 %1913
        %1915 = vrot.lane.b32.xlu0 %v1901, 96
        %v1916 = vpop.permute.xlu0 %1915
        %1917 = vrot.lane.b32.xlu0 %v1903, 96
        %v1918 = vpop.permute.xlu0 %1917
        %1919 = vrot.lane.b32.xlu0 %v1904, 96
        %v1920 = vpop.permute.xlu0 %1919
        %1921 = vrot.lane.b32.xlu0 %v1906, 96
        %v1922 = vpop.permute.xlu0 %1921
        %v1927 = vsel %vm1137, 0.0, %v1908
        %v1928 = vsel %vm1137, 0.0, %v1912
        %v1929 = vsel %vm1137, 0.0, %v1916
        %v1930 = vsel %vm1137, 0.0, %v1920
        %1935 = vrot.lane.b32.xlu0 %v1927, 16
        %v1936 = vpop.permute.xlu0 %1935
        %1937 = vrot.lane.b32.xlu0 %v1910, 16
        %v1938 = vpop.permute.xlu0 %1937
        %1939 = vrot.lane.b32.xlu0 %v1928, 16
        %v1940 = vpop.permute.xlu0 %1939
        %1941 = vrot.lane.b32.xlu0 %v1914, 16
        %v1942 = vpop.permute.xlu0 %1941
        %1943 = vrot.lane.b32.xlu0 %v1929, 16
        %v1944 = vpop.permute.xlu0 %1943
        %1945 = vrot.lane.b32.xlu0 %v1918, 16
        %v1946 = vpop.permute.xlu0 %1945
        %1947 = vrot.lane.b32.xlu0 %v1930, 16
        %v1948 = vpop.permute.xlu0 %1947
        %1949 = vrot.lane.b32.xlu0 %v1922, 16
        %v1950 = vpop.permute.xlu0 %1949
        %v1959 = vadd.f32 %v1887, %v1936
        %v1960 = vadd.f32 %v1888, %v1938
        %v1961 = vadd.f32 %v1889, %v1940
        %v1962 = vadd.f32 %v1890, %v1942
        %v1963 = vadd.f32 %v1891, %v1944
        %v1964 = vadd.f32 %v1892, %v1946
        %v1965 = vadd.f32 %v1893, %v1948
        %v1966 = vadd.f32 %v1894, %v1950
        %1967 = vrot.lane.b32.xlu0 %v1027, 96
        %v1968 = vpop.permute.xlu0 %1967
        %1969 = vrot.lane.b32.xlu0 %v1033, 96
        %v1970 = vpop.permute.xlu0 %1969
        %1971 = vrot.lane.b32.xlu0 %v1039, 96
        %v1972 = vpop.permute.xlu0 %1971
        %1973 = vrot.lane.b32.xlu0 %v1045, 96
        %v1974 = vpop.permute.xlu0 %1973
        %1975 = vrot.lane.b32.xlu0 %v1051, 96
        %v1976 = vpop.permute.xlu0 %1975
        %1977 = vrot.lane.b32.xlu0 %v1057, 96
        %v1978 = vpop.permute.xlu0 %1977
        %1979 = vrot.lane.b32.xlu0 %v1063, 96
        %v1980 = vpop.permute.xlu0 %1979
        %1981 = vrot.lane.b32.xlu0 %v1069, 96
        %v1982 = vpop.permute.xlu0 %1981
        %v1991 = vadd.f32 %v1959, %v1968
        %v1992 = vadd.f32 %v1960, %v1970
        %v1993 = vadd.f32 %v1961, %v1972
        %v1994 = vadd.f32 %v1962, %v1974
        %v1995 = vadd.f32 %v1963, %v1976
        %v1996 = vadd.f32 %v1964, %v1978
        %v1997 = vadd.f32 %v1965, %v1980
        %v1998 = vadd.f32 %v1966, %v1982
        %1999 = vrot.lane.b32.xlu0 %v277, 16
        %v2000 = vpop.permute.xlu0 %1999
        %2001 = vrot.lane.b32.xlu0 %v278, 16
        %v2002 = vpop.permute.xlu0 %2001
        %2003 = vrot.lane.b32.xlu0 %v279, 16
        %v2004 = vpop.permute.xlu0 %2003
        %2005 = vrot.lane.b32.xlu0 %v280, 16
        %v2006 = vpop.permute.xlu0 %2005
        %2007 = vrot.lane.b32.xlu0 %v281, 16
        %v2008 = vpop.permute.xlu0 %2007
        %2009 = vrot.lane.b32.xlu0 %v282, 16
        %v2010 = vpop.permute.xlu0 %2009
        %2011 = vrot.lane.b32.xlu0 %v283, 16
        %v2012 = vpop.permute.xlu0 %2011
        %2013 = vrot.lane.b32.xlu0 %v284, 16
        %v2014 = vpop.permute.xlu0 %2013
        %v2023 = vsub.f32 %v1991, %v2000
        %v2024 = vsub.f32 %v1992, %v2002
        %v2025 = vsub.f32 %v1993, %v2004
        %v2026 = vsub.f32 %v1994, %v2006
        %v2027 = vsub.f32 %v1995, %v2008
        %v2028 = vsub.f32 %v1996, %v2010
        %v2029 = vsub.f32 %v1997, %v2012
        %v2030 = vsub.f32 %v1998, %v2014
        %v2031 = vand.u32 2147483647, %v2023
        %v2032 = vand.u32 2147483647, %v2024
        %v2033 = vand.u32 2147483647, %v2025
        %v2034 = vand.u32 2147483647, %v2026
        %v2035 = vand.u32 2147483647, %v2027
        %v2036 = vand.u32 2147483647, %v2028
        %v2037 = vand.u32 2147483647, %v2029
        %v2038 = vand.u32 2147483647, %v2030
        %v2039 = vsub.f32 %v277, %v1763
        %v2040 = vsub.f32 %v278, %v1764
        %v2041 = vsub.f32 %v279, %v1765
        %v2042 = vsub.f32 %v280, %v1766
        %v2043 = vsub.f32 %v281, %v1767
        %v2044 = vsub.f32 %v282, %v1768
        %v2045 = vsub.f32 %v283, %v1769
        %v2046 = vsub.f32 %v284, %v1770
        %v2047 = vand.u32 2147483647, %v2039
        %v2048 = vand.u32 2147483647, %v2040
        %v2049 = vand.u32 2147483647, %v2041
        %v2050 = vand.u32 2147483647, %v2042
        %v2051 = vand.u32 2147483647, %v2043
        %v2052 = vand.u32 2147483647, %v2044
        %v2053 = vand.u32 2147483647, %v2045
        %v2054 = vand.u32 2147483647, %v2046
        %v2055 = vsub.f32 %v269, %v277
        %v2056 = vsub.f32 %v270, %v278
        %v2057 = vsub.f32 %v271, %v279
        %v2058 = vsub.f32 %v272, %v280
        %v2059 = vsub.f32 %v273, %v281
        %v2060 = vsub.f32 %v274, %v282
        %v2061 = vsub.f32 %v275, %v283
        %v2062 = vsub.f32 %v276, %v284
        %v2063 = vmul.f32 %v2055, %v2055
        %v2064 = vmul.f32 %v2056, %v2056
        %v2065 = vmul.f32 %v2057, %v2057
        %v2066 = vmul.f32 %v2058, %v2058
        %v2067 = vmul.f32 %v2059, %v2059
        %v2068 = vmul.f32 %v2060, %v2060
        %v2069 = vmul.f32 %v2061, %v2061
        %v2070 = vmul.f32 %v2062, %v2062
        %2079 = vrot.lane.b32.xlu0 %v1991, 112
        %v2080 = vpop.permute.xlu0 %2079
        %2081 = vrot.lane.b32.xlu0 %v1992, 112
        %v2082 = vpop.permute.xlu0 %2081
        %2083 = vrot.lane.b32.xlu0 %v1993, 112
        %v2084 = vpop.permute.xlu0 %2083
        %2085 = vrot.lane.b32.xlu0 %v1994, 112
        %v2086 = vpop.permute.xlu0 %2085
        %2087 = vrot.lane.b32.xlu0 %v1995, 112
        %v2088 = vpop.permute.xlu0 %2087
        %2089 = vrot.lane.b32.xlu0 %v1996, 112
        %v2090 = vpop.permute.xlu0 %2089
        %2091 = vrot.lane.b32.xlu0 %v1997, 112
        %v2092 = vpop.permute.xlu0 %2091
        %2093 = vrot.lane.b32.xlu0 %v1998, 112
        %v2094 = vpop.permute.xlu0 %2093
        %v2103 = vsub.f32 %v269, %v2080
        %v2104 = vsub.f32 %v270, %v2082
        %v2105 = vsub.f32 %v271, %v2084
        %v2106 = vsub.f32 %v272, %v2086
        %v2107 = vsub.f32 %v273, %v2088
        %v2108 = vsub.f32 %v274, %v2090
        %v2109 = vsub.f32 %v275, %v2092
        %v2110 = vsub.f32 %v276, %v2094
        %v2111 = vmul.f32 %v2103, %v2103
        %v2112 = vmul.f32 %v2104, %v2104
        %v2113 = vmul.f32 %v2105, %v2105
        %v2114 = vmul.f32 %v2106, %v2106
        %v2115 = vmul.f32 %v2107, %v2107
        %v2116 = vmul.f32 %v2108, %v2108
        %v2117 = vmul.f32 %v2109, %v2109
        %v2118 = vmul.f32 %v2110, %v2110
        %2127 = vrot.lane.b32.xlu0 %v2031, 112
        %v2128 = vpop.permute.xlu0 %2127
        %2129 = vrot.lane.b32.xlu0 %v2032, 112
        %v2130 = vpop.permute.xlu0 %2129
        %2131 = vrot.lane.b32.xlu0 %v2033, 112
        %v2132 = vpop.permute.xlu0 %2131
        %2133 = vrot.lane.b32.xlu0 %v2034, 112
        %v2134 = vpop.permute.xlu0 %2133
        %2135 = vrot.lane.b32.xlu0 %v2035, 112
        %v2136 = vpop.permute.xlu0 %2135
        %2137 = vrot.lane.b32.xlu0 %v2036, 112
        %v2138 = vpop.permute.xlu0 %2137
        %2139 = vrot.lane.b32.xlu0 %v2037, 112
        %v2140 = vpop.permute.xlu0 %2139
        %2141 = vrot.lane.b32.xlu0 %v2038, 112
        %v2142 = vpop.permute.xlu0 %2141
        %v2151 = vmul.f32 %v2111, %v2128
        %v2152 = vmul.f32 %v2112, %v2130
        %v2153 = vmul.f32 %v2113, %v2132
        %v2154 = vmul.f32 %v2114, %v2134
        %v2155 = vmul.f32 %v2115, %v2136
        %v2156 = vmul.f32 %v2116, %v2138
        %v2157 = vmul.f32 %v2117, %v2140
        %v2158 = vmul.f32 %v2118, %v2142
        %v2159 = vsub.f32 %v269, %v1763
        %v2160 = vsub.f32 %v270, %v1764
        %v2161 = vsub.f32 %v271, %v1765
        %v2162 = vsub.f32 %v272, %v1766
        %v2163 = vsub.f32 %v273, %v1767
        %v2164 = vsub.f32 %v274, %v1768
        %v2165 = vsub.f32 %v275, %v1769
        %v2166 = vsub.f32 %v276, %v1770
        %v2167 = vmul.f32 %v2159, %v2159
        %v2168 = vmul.f32 %v2160, %v2160
        %v2169 = vmul.f32 %v2161, %v2161
        %v2170 = vmul.f32 %v2162, %v2162
        %v2171 = vmul.f32 %v2163, %v2163
        %v2172 = vmul.f32 %v2164, %v2164
        %v2173 = vmul.f32 %v2165, %v2165
        %v2174 = vmul.f32 %v2166, %v2166
        %v2175 = vmul.f32 %v2167, %v2047
        %v2176 = vmul.f32 %v2168, %v2048
        %v2177 = vmul.f32 %v2169, %v2049
        %v2178 = vmul.f32 %v2170, %v2050
        %v2179 = vmul.f32 %v2171, %v2051
        %v2180 = vmul.f32 %v2172, %v2052
        %v2181 = vmul.f32 %v2173, %v2053
        %v2182 = vmul.f32 %v2174, %v2054
        %v2183 = vadd.f32 %v2151, %v2175
        %v2184 = vadd.f32 %v2152, %v2176
        %v2185 = vadd.f32 %v2153, %v2177
        %v2186 = vadd.f32 %v2154, %v2178
        %v2187 = vadd.f32 %v2155, %v2179
        %v2188 = vadd.f32 %v2156, %v2180
        %v2189 = vadd.f32 %v2157, %v2181
        %v2190 = vadd.f32 %v2158, %v2182
        %v2191 = vmul.f32 %v2183, %v2063
        %v2192 = vmul.f32 %v2184, %v2064
        %v2193 = vmul.f32 %v2185, %v2065
        %v2194 = vmul.f32 %v2186, %v2066
        %v2195 = vmul.f32 %v2187, %v2067
        %v2196 = vmul.f32 %v2188, %v2068
        %v2197 = vmul.f32 %v2189, %v2069
        %v2198 = vmul.f32 %v2190, %v2070
        %v2199 = vsel %vm287, %v2191, 0.0
        %v2200 = vsel %vm287, %v2192, 0.0
        %v2201 = vadd.f32 %v2199, %v2200
        %v2202 = vsel %vm287, %v2193, 0.0
        %v2203 = vadd.f32 %v2201, %v2202
        %v2204 = vsel %vm287, %v2194, 0.0
        %v2205 = vadd.f32 %v2203, %v2204
        %v2206 = vsel %vm287, %v2195, 0.0
        %v2207 = vadd.f32 %v2205, %v2206
        %v2208 = vsel %vm287, %v2196, 0.0
        %v2209 = vadd.f32 %v2207, %v2208
        %v2210 = vsel %vm287, %v2197, 0.0
        %v2211 = vadd.f32 %v2209, %v2210
        %v2212 = vsel %vm287, %v2198, 0.0
        %v2213 = vadd.f32 %v2211, %v2212
        %2214 = vadd.xlane.f32.xlu0 %v2213
        %v2215 = vpop.xlane.xlu0 %2214
        %v2216 = vrot.slane %v2215, 4
        %v2217 = vadd.f32 %v2215, %v2216
        %v2218 = vrot.slane %v2217, 2
        %v2219 = vadd.f32 %v2217, %v2218
        %v2220 = vrot.slane %v2219, 1
        %v2221 = vadd.f32 %v2219, %v2220
        %s2222 = vtos %v2221
        %v2223 = vstv %s2222
        %2224 = vst [vmem:[%s266] sm:$0xff] %v2223
        %s2225 = sand.u32 %s122, 1
        %s2226 = scalar_lea.sflag [#allocation4], %s2225
        %s2227 = sand.u32 %s122, 1
        %s2228 = smul.addr %s2227, 8
        %s2229 = scalar_lea.vmem [#allocation8], %s2228
        // Predicated region
        $region45: #{tpu_custom_call.1} parent=31 // pred_check
          %p2230 = pneg %p132
        $region46: #{tpu_custom_call.1} parent=31 // pred_check_branch
          %2232 = sbr.rel (%p2230) target = $region48
        $region47: #{tpu_custom_call.1} parent=31 // pred_region
          %s2234 = ssub.s32 128, 128
          %2235 = vsyncadd %s2226, %s2234
          %s2236 = sadd.s32 %s28, %s27
          %s2237 = smul.addr %s2236, 128
          %s2238 = scalar_lea.hbm %s3, %s2237
          %s2240 = sshll.u32 %s2229, 4
          %s2241 = int_to_ptr.vmem [resolvable:$true] %s2240
          %2243 = dma.vmem_to_hbm [thread:$0]  %s2241, 128, %s2238, %s2226
        $region48: #{tpu_custom_call.1} parent=31 // pred_fallthru
          _
      $region32: #{tpu_custom_call.1} parent=5 // pred_fallthru
        _
      %p2244 = scmp.le.s32.totalorder 2, %s18
      // Predicated region
      $region49: #{tpu_custom_call.1} parent=5 // pred_check
        %p2245 = pneg %p2244
      $region50: #{tpu_custom_call.1} parent=5 // pred_check_branch
        %2247 = sbr.rel (%p2245) target = $region52
      $region51: #{tpu_custom_call.1} parent=5 // pred_region
        %s2248 = ssub.s32 %s18, 2
        // Predicated region
        $region53: #{tpu_custom_call.1} parent=51 // pred_check
          %p2249 = pneg %p138
        $region54: #{tpu_custom_call.1} parent=51 // pred_check_branch
          %2251 = sbr.rel (%p2249) target = $region56
        $region55: #{tpu_custom_call.1} parent=51 // pred_region
          %s2252 = sand.u32 %s123, 1
          %s2253 = scalar_lea.sflag [#allocation4], %s2252
          %s2254 = sand.u32 %s123, 1
          %s2255 = smul.addr %s2254, 8
          %s2256 = scalar_lea.vmem [#allocation8], %s2255
          %2257 = dma.done %s2253, 128
        $region56: #{tpu_custom_call.1} parent=51 // pred_fallthru
          _
      $region52: #{tpu_custom_call.1} parent=5 // pred_fallthru
        _
    $region6: #{tpu_custom_call.1} parent=1 // loop_footer
      %s22 = sadd.s32 1, %s18
    $region7: #{tpu_custom_call.1} parent=1 // loop_footer_branch
      %17 = sbr.rel target = $region3
    $region8: #{tpu_custom_call.1} parent=1 // loop_exit
      _
    %2258 = vsyncpa [#allocation3], 1
    %s2259 = scalar_lea.sflag [#allocation3], 1
    %2260 = vsyncpa %s2259, 1
    %2261 = vsyncpa [#allocation6], 1
    %s2262 = scalar_lea.sflag [#allocation6], 1
    %2263 = vsyncpa %s2262, 1
    %2264 = vsyncpa [#allocation4], 1
    %s2265 = scalar_lea.sflag [#allocation4], 1
    %2266 = vsyncpa %s2265, 1

</llo_original>
